<compile_context>
chip_gen: v7x
topology: tpu7x:2x2x1
jax: 0.10.0
libtpu: 0.0.40
codegen_flags: <defaults>
</compile_context>

<pallas_src>
import functools

import jax
import jax.numpy as jnp
from jax import lax
from jax.experimental import pallas as pl
from jax.experimental.pallas import tpu as pltpu

LANE = 128            # TPU lane width; activations / weight columns padded to this
_W_ROWS = LANE        # rows reserved per layer for the (in, out) weight block
_B_ROWS = 8           # rows reserved per layer for the bias (row 0 used)
_BLOCK_ROWS = _W_ROWS + _B_ROWS   # 136 rows per linear layer (multiple of 8)


# ----------------------------------------------------------------------------
# digamma for x >= 1 (recurrence pushes x >= 9, then asymptotic series).
# Only evaluated on (B, 1) vectors inside the kernel (alpha >= 1 always holds
# because alpha = evidence + 1 and softplus >= 0).
# ----------------------------------------------------------------------------
def _digamma(x):
    acc = jnp.zeros_like(x)
    for _ in range(8):
        acc = acc - 1.0 / x
        x = x + 1.0
    inv = 1.0 / x
    inv2 = inv * inv
    series = (jnp.log(x) - 0.5 * inv
              - inv2 * (1.0 / 12.0 - inv2 * (1.0 / 120.0 - inv2 * (1.0 / 252.0))))
    return acc + series


# ----------------------------------------------------------------------------
# Fused kernel: per-view classifiers -> DS combination chain -> ce loss mean.
# ----------------------------------------------------------------------------
def _fused_tmc_kernel(y_ref, *refs, n_views, layer_counts, batch, classes):
    x_refs = refs[:n_views]                  # (batch, 128) padded inputs, VMEM
    p_refs = refs[n_views:2 * n_views]       # (n_layers*136, 128) packed params
    out_ref = refs[2 * n_views]              # (n_views + 2, batch, 128), VMEM

    c_f = float(classes)
    col = lax.broadcasted_iota(jnp.int32, (batch, LANE), 1)
    cmask = (col < classes).astype(jnp.float32)   # 1.0 in the real class columns

    # ---- per-view classifiers (Linear... -> Linear(.,64) -> Sigmoid
    #      -> Linear(64, classes) -> Softplus; Dropout = identity) -----------
    evidence = []
    for v in range(n_views):
        h = x_refs[v][...]                   # (batch, 128); zero in padded cols
        nl = layer_counts[v]
        for i in range(nl):
            off = i * _BLOCK_ROWS
            W = p_refs[v][off:off + _W_ROWS, :]                    # (128, 128)
            b = p_refs[v][off + _W_ROWS:off + _W_ROWS + 1, :]      # (1, 128)
            h = jnp.dot(h, W, preferred_element_type=jnp.float32) + b
            if i == nl - 2:
                # sigmoid(0)=0.5 garbage in padded columns is annihilated by
                # the next layer's zero-padded weight rows.
                h = jax.nn.sigmoid(h)
            elif i == nl - 1:
                # evidence: exact zeros in padded columns.
                h = jax.nn.softplus(h) * cmask
        evidence.append(h)
        out_ref[v] = h                       # full (8,128) unmasked store

    # ---- Dempster-Shafer combination chain ---------------------------------
    # Works directly on evidence e (= alpha - 1, zero in padded columns).
    # The 1/(1-Conflict) normalisation of b_a cancels exactly against
    # S_a = classes*(1-Conflict)/(u1*u2) in e_a = b_a*S_a, so:
    #   e_a = (b1*b2 + b1*u2 + b2*u1) * S1 * S2 / classes
    # (identical math for non-degenerate inputs; avoids forming 1-Conflict).
    def combine(e1, e2):
        S1 = jnp.sum(e1, axis=1, keepdims=True) + c_f
        S2 = jnp.sum(e2, axis=1, keepdims=True) + c_f
        inv_S1 = pl.reciprocal(S1)           # exact (approx=False)
        inv_S2 = pl.reciprocal(S2)
        b1 = e1 * inv_S1
        b2 = e2 * inv_S2
        u1 = c_f * inv_S1
        u2 = c_f * inv_S2
        return (b1 * b2 + b1 * u2 + b2 * u1) * (S1 * S2 * (1.0 / c_f))

    e_a = combine(evidence[0], evidence[1])
    for v in range(1, n_views - 1):
        e_a = combine(e_a, evidence[v + 1])
    out_ref[n_views] = e_a                   # evidence_a, lane-dense store

    # ---- ce_loss_single + mean ----------------------------------------------
    # one-hot only gathers alpha_a[b, y_b]; digamma runs on two (B,1) vectors.
    S_tot = jnp.sum(e_a, axis=1, keepdims=True) + c_f          # (batch, 1)
    row = lax.broadcasted_iota(jnp.int32, (batch, LANE), 0)
    label = jnp.zeros((batch, LANE), jnp.float32)
    for b in range(batch):                   # y in SMEM -> scalar-unit reads
        yb = y_ref[b]
        label = jnp.where(jnp.logical_and(row == b, col == yb), 1.0, label)
    alpha_y = jnp.sum(label * e_a, axis=1, keepdims=True) + 1.0  # (batch, 1)
    A = _digamma(S_tot) - _digamma(alpha_y)
    loss = jnp.sum(A) * (1.0 / batch)
    # broadcast the scalar so the last slab is also a full unmasked store
    out_ref[n_views + 1] = loss + jnp.zeros((batch, LANE), jnp.float32)


# ----------------------------------------------------------------------------
# Parameter packing: one zero-padded, lane-dense buffer per view.
# Each linear layer occupies 136 rows: rows [0,128) hold W (zero-padded to
# 128x128), row 128 holds the bias (row block padded to 8 rows).
# ----------------------------------------------------------------------------
def pack_classifier_params(params):
    """params: list of (W:(in,out), b:(1,out) or (out,)) -> (n_layers*136, 128)."""
    blocks = []
    for W, b in params:
        in_d, out_d = W.shape
        assert in_d <= LANE and out_d <= LANE, \
            "TODO(synk): add K/N tiling for layer dims > 128"
        Wp = jnp.zeros((_W_ROWS, LANE), jnp.float32).at[:in_d, :out_d].set(W)
        bp = jnp.zeros((_B_ROWS, LANE), jnp.float32).at[0, :out_d].set(
            jnp.asarray(b).reshape(-1))
        blocks.append(jnp.concatenate([Wp, bp], axis=0))
    return jnp.concatenate(blocks, axis=0)


# ----------------------------------------------------------------------------
# TMC forward — single fused pallas_call.
# ----------------------------------------------------------------------------
@functools.partial(jax.jit, static_argnames=("classes",))
def tmc_forward(packed_params, X, y, *, classes):
    n_views = len(X)
    B = X[0].shape[0]
    layer_counts = tuple(p.shape[0] // _BLOCK_ROWS for p in packed_params)

    x_pad = []
    for x in X:
        d = x.shape[1]
        assert d <= LANE, "TODO(synk): add K tiling for input dims > 128"
        x_pad.append(jnp.zeros((B, LANE), jnp.float32).at[:, :d].set(x))

    kernel = functools.partial(
        _fused_tmc_kernel, n_views=n_views, layer_counts=layer_counts,
        batch=B, classes=classes)

    out = pl.pallas_call(
        kernel,
        out_shape=jax.ShapeDtypeStruct((n_views + 2, B, LANE), jnp.float32),
        in_specs=([pl.BlockSpec(memory_space=pltpu.MemorySpace.SMEM)]       # y
                  + [pl.BlockSpec(memory_space=pltpu.MemorySpace.VMEM)]
                  * (2 * n_views)),                                          # x, params
        out_specs=pl.BlockSpec(memory_space=pltpu.MemorySpace.VMEM),
    )(y.astype(jnp.int32), *x_pad, *packed_params)

    evidence = [out[v, :, :classes] for v in range(n_views)]
    evidence_a = out[n_views, :, :classes]
    loss = out[n_views + 1, 0, 0]
    return evidence, evidence_a, loss


# ----------------------------------------------------------------------------
# Deterministic parameter init (PyTorch nn.Linear style uniform bounds)
# ----------------------------------------------------------------------------
def init_classifier_params(key, classifier_dims_v, classes):
    dims = list(classifier_dims_v) + [64, classes]
    params = []
    for i in range(len(dims) - 1):
        key, k1, k2 = jax.random.split(key, 3)
        bound = 1.0 / (dims[i] ** 0.5)
        W = jax.random.uniform(k1, (dims[i], dims[i + 1]), jnp.float32, -bound, bound)
        b = jax.random.uniform(k2, (1, dims[i + 1]), jnp.float32, -bound, bound)
        params.append((W, b))
    return params, key


# ----------------------------------------------------------------------------
# Pure-JAX reference (mirrors the PyTorch module, for correctness check)
# ----------------------------------------------------------------------------
def _ref_forward(params_per_view, X, y, classes):
    evidence = []
    for v, params in enumerate(params_per_view):
        h = X[v]
        n = len(params)
        for i, (W, b) in enumerate(params):
            h = h @ W + b
            if i == n - 2:
                h = jax.nn.sigmoid(h)
            elif i == n - 1:
                h = jax.nn.softplus(h)
        evidence.append(h)
    alpha = [e + 1.0 for e in evidence]

    def combin(a1, a2):
        S1 = a1.sum(1, keepdims=True); S2 = a2.sum(1, keepdims=True)
        b1 = (a1 - 1.0) / S1; b2 = (a2 - 1.0) / S2
        u1 = classes / S1; u2 = classes / S2
        bb = jnp.einsum('bi,bj->bij', b1, b2)
        C_ = bb.sum((1, 2)) - jnp.trace(bb, axis1=1, axis2=2)
        denom = (1.0 - C_)[:, None]
        b_a = (b1 * b2 + b1 * u2 + b2 * u1) / denom
        u_a = u1 * u2 / denom
        S_a = classes / u_a
        return b_a * S_a + 1.0

    alpha_a = combin(alpha[0], alpha[1])
    for v in range(1, len(alpha) - 1):
        alpha_a = combin(alpha_a, alpha[v + 1])
    S = alpha_a.sum(1, keepdims=True)
    label = jax.nn.one_hot(y, classes, dtype=jnp.float32)
    dg = jax.scipy.special.digamma
    A = jnp.sum(label * (dg(S) - dg(alpha_a)), axis=1, keepdims=True)
    return evidence, alpha_a - 1.0, jnp.mean(A)


if __name__ == "__main__":
    classes = 4
    views = 3
    classifier_dims = [[32], [16], [24]]
    batch = 8

    key = jax.random.PRNGKey(0)
    params_per_view = []
    for v in range(views):
        p, key = init_classifier_params(key, classifier_dims[v], classes)
        params_per_view.append(p)

    X = []
    for v in range(views):
        key, kx = jax.random.split(key)
        X.append(jax.random.normal(kx, (batch, classifier_dims[v][0]), jnp.float32))
    key, ky = jax.random.split(key)
    y = jax.random.randint(ky, (batch,), 0, classes, jnp.int32)

    # Pack once (in a training loop this is done outside the step).
    packed = [pack_classifier_params(p) for p in params_per_view]

    evidence, evidence_a, loss = tmc_forward(packed, X, y, classes=classes)
    evidence = [jax.block_until_ready(e) for e in evidence]
    evidence_a = jax.block_until_ready(evidence_a)
    loss = jax.block_until_ready(loss)

    # sanity check against pure-JAX reference
    ev_ref, ev_a_ref, loss_ref = _ref_forward(params_per_view, X, y, classes)
    for e, er in zip(evidence, ev_ref):
        assert jnp.allclose(e, er, rtol=1e-3, atol=1e-3)
    assert jnp.allclose(evidence_a, ev_a_ref, rtol=1e-3, atol=1e-3)
    assert jnp.allclose(loss, loss_ref, rtol=1e-3, atol=1e-3)

    print("KERNEL_OK")
</pallas_src>

<mosaic_0001>
module attributes {stable_mosaic.version = 11 : i64} {
  func.func @_fused_tmc_kernel(%arg0: memref<8xi32, #tpu.memory_space<smem>>, %arg1: memref<8x128xf32, #tpu.memory_space<vmem>>, %arg2: memref<8x128xf32, #tpu.memory_space<vmem>>, %arg3: memref<8x128xf32, #tpu.memory_space<vmem>>, %arg4: memref<272x128xf32, #tpu.memory_space<vmem>>, %arg5: memref<272x128xf32, #tpu.memory_space<vmem>>, %arg6: memref<272x128xf32, #tpu.memory_space<vmem>>, %arg7: memref<5x8x128xf32, #tpu.memory_space<vmem>>) attributes {dimension_semantics = [], scalar_prefetch = 0 : i64, scratch_operands = 0 : i64, tpu.core_type = #tpu.core_type<tc>} {
    %0 = tpu.iota {dimensions = array<i32: 1>} : vector<8x128xi32>
    %c4_i32 = arith.constant 4 : i32
    %1 = vector.broadcast %c4_i32 : i32 to vector<8x128xi32>
    %2 = arith.cmpi slt, %0, %1 : vector<8x128xi32>
    %3 = arith.extui %2 : vector<8x128xi1> to vector<8x128xi32>
    %4 = arith.sitofp %3 : vector<8x128xi32> to vector<8x128xf32>
    %c0 = arith.constant 0 : index
    %c0_0 = arith.constant 0 : index
    %5 = vector.load %arg1[%c0, %c0_0] : memref<8x128xf32, #tpu.memory_space<vmem>>, vector<8x128xf32>
    %c0_1 = arith.constant 0 : index
    %c0_2 = arith.constant 0 : index
    %6 = vector.load %arg4[%c0_1, %c0_2] : memref<272x128xf32, #tpu.memory_space<vmem>>, vector<128x128xf32>
    %c128 = arith.constant 128 : index
    %c0_3 = arith.constant 0 : index
    %7 = vector.load %arg4[%c128, %c0_3] : memref<272x128xf32, #tpu.memory_space<vmem>>, vector<1x128xf32>
    %cst = arith.constant dense<0.000000e+00> : vector<8x128xf32>
    %8 = tpu.matmul %5, %6, %cst {dimension_numbers = #tpu.dot_dimension_numbers<[1], [0], [0], [1], [0, 0, 1, 1], [], []>} : vector<8x128xf32>, vector<128x128xf32>, vector<8x128xf32> -> vector<8x128xf32>
    %9 = vector.broadcast %7 : vector<1x128xf32> to vector<8x128xf32>
    %10 = arith.addf %8, %9 : vector<8x128xf32>
    %11 = arith.negf %10 : vector<8x128xf32>
    %12 = math.exp %11 : vector<8x128xf32>
    %cst_4 = arith.constant 1.000000e+00 : f32
    %13 = vector.broadcast %cst_4 : f32 to vector<8x128xf32>
    %14 = arith.addf %13, %12 : vector<8x128xf32>
    %15 = arith.divf %13, %14 : vector<8x128xf32>
    %c136 = arith.constant 136 : index
    %c0_5 = arith.constant 0 : index
    %16 = vector.load %arg4[%c136, %c0_5] : memref<272x128xf32, #tpu.memory_space<vmem>>, vector<128x128xf32>
    %c264 = arith.constant 264 : index
    %c0_6 = arith.constant 0 : index
    %17 = vector.load %arg4[%c264, %c0_6] : memref<272x128xf32, #tpu.memory_space<vmem>>, vector<1x128xf32>
    %cst_7 = arith.constant dense<0.000000e+00> : vector<8x128xf32>
    %18 = tpu.matmul %15, %16, %cst_7 {dimension_numbers = #tpu.dot_dimension_numbers<[1], [0], [0], [1], [0, 0, 1, 1], [], []>} : vector<8x128xf32>, vector<128x128xf32>, vector<8x128xf32> -> vector<8x128xf32>
    %19 = vector.broadcast %17 : vector<1x128xf32> to vector<8x128xf32>
    %20 = arith.addf %18, %19 : vector<8x128xf32>
    %cst_8 = arith.constant 0.000000e+00 : f32
    %21 = vector.broadcast %cst_8 : f32 to vector<8x128xf32>
    %22 = arith.maximumf %20, %21 : vector<8x128xf32>
    %23 = vector.broadcast %cst_8 : f32 to vector<8x128xf32>
    %24 = arith.subf %20, %23 : vector<8x128xf32>
    %25 = arith.cmpf one, %24, %24 : vector<8x128xf32>
    %26 = vector.broadcast %cst_8 : f32 to vector<8x128xf32>
    %27 = arith.addf %20, %26 : vector<8x128xf32>
    %28 = math.absf %24 : vector<8x128xf32>
    %cst_9 = arith.constant 0.000000e+00 : f32
    %29 = vector.broadcast %cst_9 : f32 to vector<8x128xf32>
    %30 = arith.subf %29, %28 : vector<8x128xf32>
    %31 = math.exp %30 : vector<8x128xf32>
    %32 = math.log1p %31 : vector<8x128xf32>
    %33 = arith.addf %22, %32 : vector<8x128xf32>
    %34 = arith.select %25, %27, %33 : vector<8x128xi1>, vector<8x128xf32>
    %35 = arith.mulf %34, %4 : vector<8x128xf32>
    %c0_10 = arith.constant 0 : index
    %c0_11 = arith.constant 0 : index
    %c0_12 = arith.constant 0 : index
    %36 = vector.load %arg7[%c0_10, %c0_11, %c0_12] : memref<5x8x128xf32, #tpu.memory_space<vmem>>, vector<1x8x128xf32>
    %37 = vector.shape_cast %36 : vector<1x8x128xf32> to vector<8x128xf32>
    %38 = vector.shape_cast %35 : vector<8x128xf32> to vector<1x8x128xf32>
    tpu.vector_store %arg7[%c0_10, %c0_11, %c0_12], %38 {strides = array<i32>} : memref<5x8x128xf32, #tpu.memory_space<vmem>>, vector<1x8x128xf32>,
    %c0_13 = arith.constant 0 : index
    %c0_14 = arith.constant 0 : index
    %39 = vector.load %arg2[%c0_13, %c0_14] : memref<8x128xf32, #tpu.memory_space<vmem>>, vector<8x128xf32>
    %c0_15 = arith.constant 0 : index
    %c0_16 = arith.constant 0 : index
    %40 = vector.load %arg5[%c0_15, %c0_16] : memref<272x128xf32, #tpu.memory_space<vmem>>, vector<128x128xf32>
    %c128_17 = arith.constant 128 : index
    %c0_18 = arith.constant 0 : index
    %41 = vector.load %arg5[%c128_17, %c0_18] : memref<272x128xf32, #tpu.memory_space<vmem>>, vector<1x128xf32>
    %cst_19 = arith.constant dense<0.000000e+00> : vector<8x128xf32>
    %42 = tpu.matmul %39, %40, %cst_19 {dimension_numbers = #tpu.dot_dimension_numbers<[1], [0], [0], [1], [0, 0, 1, 1], [], []>} : vector<8x128xf32>, vector<128x128xf32>, vector<8x128xf32> -> vector<8x128xf32>
    %43 = vector.broadcast %41 : vector<1x128xf32> to vector<8x128xf32>
    %44 = arith.addf %42, %43 : vector<8x128xf32>
    %45 = arith.negf %44 : vector<8x128xf32>
    %46 = math.exp %45 : vector<8x128xf32>
    %cst_20 = arith.constant 1.000000e+00 : f32
    %47 = vector.broadcast %cst_20 : f32 to vector<8x128xf32>
    %48 = arith.addf %47, %46 : vector<8x128xf32>
    %49 = arith.divf %47, %48 : vector<8x128xf32>
    %c136_21 = arith.constant 136 : index
    %c0_22 = arith.constant 0 : index
    %50 = vector.load %arg5[%c136_21, %c0_22] : memref<272x128xf32, #tpu.memory_space<vmem>>, vector<128x128xf32>
    %c264_23 = arith.constant 264 : index
    %c0_24 = arith.constant 0 : index
    %51 = vector.load %arg5[%c264_23, %c0_24] : memref<272x128xf32, #tpu.memory_space<vmem>>, vector<1x128xf32>
    %cst_25 = arith.constant dense<0.000000e+00> : vector<8x128xf32>
    %52 = tpu.matmul %49, %50, %cst_25 {dimension_numbers = #tpu.dot_dimension_numbers<[1], [0], [0], [1], [0, 0, 1, 1], [], []>} : vector<8x128xf32>, vector<128x128xf32>, vector<8x128xf32> -> vector<8x128xf32>
    %53 = vector.broadcast %51 : vector<1x128xf32> to vector<8x128xf32>
    %54 = arith.addf %52, %53 : vector<8x128xf32>
    %cst_26 = arith.constant 0.000000e+00 : f32
    %55 = vector.broadcast %cst_26 : f32 to vector<8x128xf32>
    %56 = arith.maximumf %54, %55 : vector<8x128xf32>
    %57 = vector.broadcast %cst_26 : f32 to vector<8x128xf32>
    %58 = arith.subf %54, %57 : vector<8x128xf32>
    %59 = arith.cmpf one, %58, %58 : vector<8x128xf32>
    %60 = vector.broadcast %cst_26 : f32 to vector<8x128xf32>
    %61 = arith.addf %54, %60 : vector<8x128xf32>
    %62 = math.absf %58 : vector<8x128xf32>
    %cst_27 = arith.constant 0.000000e+00 : f32
    %63 = vector.broadcast %cst_27 : f32 to vector<8x128xf32>
    %64 = arith.subf %63, %62 : vector<8x128xf32>
    %65 = math.exp %64 : vector<8x128xf32>
    %66 = math.log1p %65 : vector<8x128xf32>
    %67 = arith.addf %56, %66 : vector<8x128xf32>
    %68 = arith.select %59, %61, %67 : vector<8x128xi1>, vector<8x128xf32>
    %69 = arith.mulf %68, %4 : vector<8x128xf32>
    %c1 = arith.constant 1 : index
    %c0_28 = arith.constant 0 : index
    %c0_29 = arith.constant 0 : index
    %70 = vector.load %arg7[%c1, %c0_28, %c0_29] : memref<5x8x128xf32, #tpu.memory_space<vmem>>, vector<1x8x128xf32>
    %71 = vector.shape_cast %70 : vector<1x8x128xf32> to vector<8x128xf32>
    %72 = vector.shape_cast %69 : vector<8x128xf32> to vector<1x8x128xf32>
    tpu.vector_store %arg7[%c1, %c0_28, %c0_29], %72 {strides = array<i32>} : memref<5x8x128xf32, #tpu.memory_space<vmem>>, vector<1x8x128xf32>,
    %c0_30 = arith.constant 0 : index
    %c0_31 = arith.constant 0 : index
    %73 = vector.load %arg3[%c0_30, %c0_31] : memref<8x128xf32, #tpu.memory_space<vmem>>, vector<8x128xf32>
    %c0_32 = arith.constant 0 : index
    %c0_33 = arith.constant 0 : index
    %74 = vector.load %arg6[%c0_32, %c0_33] : memref<272x128xf32, #tpu.memory_space<vmem>>, vector<128x128xf32>
    %c128_34 = arith.constant 128 : index
    %c0_35 = arith.constant 0 : index
    %75 = vector.load %arg6[%c128_34, %c0_35] : memref<272x128xf32, #tpu.memory_space<vmem>>, vector<1x128xf32>
    %cst_36 = arith.constant dense<0.000000e+00> : vector<8x128xf32>
    %76 = tpu.matmul %73, %74, %cst_36 {dimension_numbers = #tpu.dot_dimension_numbers<[1], [0], [0], [1], [0, 0, 1, 1], [], []>} : vector<8x128xf32>, vector<128x128xf32>, vector<8x128xf32> -> vector<8x128xf32>
    %77 = vector.broadcast %75 : vector<1x128xf32> to vector<8x128xf32>
    %78 = arith.addf %76, %77 : vector<8x128xf32>
    %79 = arith.negf %78 : vector<8x128xf32>
    %80 = math.exp %79 : vector<8x128xf32>
    %cst_37 = arith.constant 1.000000e+00 : f32
    %81 = vector.broadcast %cst_37 : f32 to vector<8x128xf32>
    %82 = arith.addf %81, %80 : vector<8x128xf32>
    %83 = arith.divf %81, %82 : vector<8x128xf32>
    %c136_38 = arith.constant 136 : index
    %c0_39 = arith.constant 0 : index
    %84 = vector.load %arg6[%c136_38, %c0_39] : memref<272x128xf32, #tpu.memory_space<vmem>>, vector<128x128xf32>
    %c264_40 = arith.constant 264 : index
    %c0_41 = arith.constant 0 : index
    %85 = vector.load %arg6[%c264_40, %c0_41] : memref<272x128xf32, #tpu.memory_space<vmem>>, vector<1x128xf32>
    %cst_42 = arith.constant dense<0.000000e+00> : vector<8x128xf32>
    %86 = tpu.matmul %83, %84, %cst_42 {dimension_numbers = #tpu.dot_dimension_numbers<[1], [0], [0], [1], [0, 0, 1, 1], [], []>} : vector<8x128xf32>, vector<128x128xf32>, vector<8x128xf32> -> vector<8x128xf32>
    %87 = vector.broadcast %85 : vector<1x128xf32> to vector<8x128xf32>
    %88 = arith.addf %86, %87 : vector<8x128xf32>
    %cst_43 = arith.constant 0.000000e+00 : f32
    %89 = vector.broadcast %cst_43 : f32 to vector<8x128xf32>
    %90 = arith.maximumf %88, %89 : vector<8x128xf32>
    %91 = vector.broadcast %cst_43 : f32 to vector<8x128xf32>
    %92 = arith.subf %88, %91 : vector<8x128xf32>
    %93 = arith.cmpf one, %92, %92 : vector<8x128xf32>
    %94 = vector.broadcast %cst_43 : f32 to vector<8x128xf32>
    %95 = arith.addf %88, %94 : vector<8x128xf32>
    %96 = math.absf %92 : vector<8x128xf32>
    %cst_44 = arith.constant 0.000000e+00 : f32
    %97 = vector.broadcast %cst_44 : f32 to vector<8x128xf32>
    %98 = arith.subf %97, %96 : vector<8x128xf32>
    %99 = math.exp %98 : vector<8x128xf32>
    %100 = math.log1p %99 : vector<8x128xf32>
    %101 = arith.addf %90, %100 : vector<8x128xf32>
    %102 = arith.select %93, %95, %101 : vector<8x128xi1>, vector<8x128xf32>
    %103 = arith.mulf %102, %4 : vector<8x128xf32>
    %c2 = arith.constant 2 : index
    %c0_45 = arith.constant 0 : index
    %c0_46 = arith.constant 0 : index
    %104 = vector.load %arg7[%c2, %c0_45, %c0_46] : memref<5x8x128xf32, #tpu.memory_space<vmem>>, vector<1x8x128xf32>
    %105 = vector.shape_cast %104 : vector<1x8x128xf32> to vector<8x128xf32>
    %106 = vector.shape_cast %103 : vector<8x128xf32> to vector<1x8x128xf32>
    tpu.vector_store %arg7[%c2, %c0_45, %c0_46], %106 {strides = array<i32>} : memref<5x8x128xf32, #tpu.memory_space<vmem>>, vector<1x8x128xf32>,
    %cst_47 = arith.constant dense<0.000000e+00> : vector<8xf32>
    %107 = vector.multi_reduction <add>, %35, %cst_47 [1] : vector<8x128xf32> to vector<8xf32>
    %108 = vector.shape_cast %107 : vector<8xf32> to vector<8x1xf32>
    %cst_48 = arith.constant 4.000000e+00 : f32
    %109 = vector.broadcast %cst_48 : f32 to vector<8x1xf32>
    %110 = arith.addf %108, %109 : vector<8x1xf32>
    %cst_49 = arith.constant dense<0.000000e+00> : vector<8xf32>
    %111 = vector.multi_reduction <add>, %69, %cst_49 [1] : vector<8x128xf32> to vector<8xf32>
    %112 = vector.shape_cast %111 : vector<8xf32> to vector<8x1xf32>
    %cst_50 = arith.constant 4.000000e+00 : f32
    %113 = vector.broadcast %cst_50 : f32 to vector<8x1xf32>
    %114 = arith.addf %112, %113 : vector<8x1xf32>
    %115 = tpu.reciprocal %110 : vector<8x1xf32> -> vector<8x1xf32>
    %116 = tpu.reciprocal %114 : vector<8x1xf32> -> vector<8x1xf32>
    %117 = vector.broadcast %115 : vector<8x1xf32> to vector<8x128xf32>
    %118 = arith.mulf %35, %117 : vector<8x128xf32>
    %119 = vector.broadcast %116 : vector<8x1xf32> to vector<8x128xf32>
    %120 = arith.mulf %69, %119 : vector<8x128xf32>
    %cst_51 = arith.constant 4.000000e+00 : f32
    %121 = vector.broadcast %cst_51 : f32 to vector<8x1xf32>
    %122 = arith.mulf %121, %115 : vector<8x1xf32>
    %cst_52 = arith.constant 4.000000e+00 : f32
    %123 = vector.broadcast %cst_52 : f32 to vector<8x1xf32>
    %124 = arith.mulf %123, %116 : vector<8x1xf32>
    %125 = arith.mulf %118, %120 : vector<8x128xf32>
    %126 = vector.broadcast %124 : vector<8x1xf32> to vector<8x128xf32>
    %127 = arith.mulf %118, %126 : vector<8x128xf32>
    %128 = arith.addf %125, %127 : vector<8x128xf32>
    %129 = vector.broadcast %122 : vector<8x1xf32> to vector<8x128xf32>
    %130 = arith.mulf %120, %129 : vector<8x128xf32>
    %131 = arith.addf %128, %130 : vector<8x128xf32>
    %132 = arith.mulf %110, %114 : vector<8x1xf32>
    %cst_53 = arith.constant 2.500000e-01 : f32
    %133 = vector.broadcast %cst_53 : f32 to vector<8x1xf32>
    %134 = arith.mulf %132, %133 : vector<8x1xf32>
    %135 = vector.broadcast %134 : vector<8x1xf32> to vector<8x128xf32>
    %136 = arith.mulf %131, %135 : vector<8x128xf32>
    %cst_54 = arith.constant dense<0.000000e+00> : vector<8xf32>
    %137 = vector.multi_reduction <add>, %136, %cst_54 [1] : vector<8x128xf32> to vector<8xf32>
    %138 = vector.shape_cast %137 : vector<8xf32> to vector<8x1xf32>
    %cst_55 = arith.constant 4.000000e+00 : f32
    %139 = vector.broadcast %cst_55 : f32 to vector<8x1xf32>
    %140 = arith.addf %138, %139 : vector<8x1xf32>
    %cst_56 = arith.constant dense<0.000000e+00> : vector<8xf32>
    %141 = vector.multi_reduction <add>, %103, %cst_56 [1] : vector<8x128xf32> to vector<8xf32>
    %142 = vector.shape_cast %141 : vector<8xf32> to vector<8x1xf32>
    %cst_57 = arith.constant 4.000000e+00 : f32
    %143 = vector.broadcast %cst_57 : f32 to vector<8x1xf32>
    %144 = arith.addf %142, %143 : vector<8x1xf32>
    %145 = tpu.reciprocal %140 : vector<8x1xf32> -> vector<8x1xf32>
    %146 = tpu.reciprocal %144 : vector<8x1xf32> -> vector<8x1xf32>
    %147 = vector.broadcast %145 : vector<8x1xf32> to vector<8x128xf32>
    %148 = arith.mulf %136, %147 : vector<8x128xf32>
    %149 = vector.broadcast %146 : vector<8x1xf32> to vector<8x128xf32>
    %150 = arith.mulf %103, %149 : vector<8x128xf32>
    %cst_58 = arith.constant 4.000000e+00 : f32
    %151 = vector.broadcast %cst_58 : f32 to vector<8x1xf32>
    %152 = arith.mulf %151, %145 : vector<8x1xf32>
    %cst_59 = arith.constant 4.000000e+00 : f32
    %153 = vector.broadcast %cst_59 : f32 to vector<8x1xf32>
    %154 = arith.mulf %153, %146 : vector<8x1xf32>
    %155 = arith.mulf %148, %150 : vector<8x128xf32>
    %156 = vector.broadcast %154 : vector<8x1xf32> to vector<8x128xf32>
    %157 = arith.mulf %148, %156 : vector<8x128xf32>
    %158 = arith.addf %155, %157 : vector<8x128xf32>
    %159 = vector.broadcast %152 : vector<8x1xf32> to vector<8x128xf32>
    %160 = arith.mulf %150, %159 : vector<8x128xf32>
    %161 = arith.addf %158, %160 : vector<8x128xf32>
    %162 = arith.mulf %140, %144 : vector<8x1xf32>
    %cst_60 = arith.constant 2.500000e-01 : f32
    %163 = vector.broadcast %cst_60 : f32 to vector<8x1xf32>
    %164 = arith.mulf %162, %163 : vector<8x1xf32>
    %165 = vector.broadcast %164 : vector<8x1xf32> to vector<8x128xf32>
    %166 = arith.mulf %161, %165 : vector<8x128xf32>
    %c3 = arith.constant 3 : index
    %c0_61 = arith.constant 0 : index
    %c0_62 = arith.constant 0 : index
    %167 = vector.load %arg7[%c3, %c0_61, %c0_62] : memref<5x8x128xf32, #tpu.memory_space<vmem>>, vector<1x8x128xf32>
    %168 = vector.shape_cast %167 : vector<1x8x128xf32> to vector<8x128xf32>
    %169 = vector.shape_cast %166 : vector<8x128xf32> to vector<1x8x128xf32>
    tpu.vector_store %arg7[%c3, %c0_61, %c0_62], %169 {strides = array<i32>} : memref<5x8x128xf32, #tpu.memory_space<vmem>>, vector<1x8x128xf32>,
    %cst_63 = arith.constant dense<0.000000e+00> : vector<8xf32>
    %170 = vector.multi_reduction <add>, %166, %cst_63 [1] : vector<8x128xf32> to vector<8xf32>
    %171 = vector.shape_cast %170 : vector<8xf32> to vector<8x1xf32>
    %cst_64 = arith.constant 4.000000e+00 : f32
    %172 = vector.broadcast %cst_64 : f32 to vector<8x1xf32>
    %173 = arith.addf %171, %172 : vector<8x1xf32>
    %174 = tpu.iota {dimensions = array<i32: 0>} : vector<8x128xi32>
    %cst_65 = arith.constant 0.000000e+00 : f32
    %175 = vector.broadcast %cst_65 : f32 to vector<8x128xf32>
    %c0_66 = arith.constant 0 : index
    %176 = memref.load %arg0[%c0_66] : memref<8xi32, #tpu.memory_space<smem>>
    %c0_i32 = arith.constant 0 : i32
    %177 = vector.broadcast %c0_i32 : i32 to vector<8x128xi32>
    %178 = arith.cmpi eq, %174, %177 : vector<8x128xi32>
    %179 = vector.broadcast %176 : i32 to vector<8x128xi32>
    %180 = arith.cmpi eq, %0, %179 : vector<8x128xi32>
    %181 = arith.andi %178, %180 : vector<8x128xi1>
    %cst_67 = arith.constant 1.000000e+00 : f32
    %182 = vector.broadcast %cst_67 : f32 to vector<8x128xf32>
    %183 = arith.select %181, %182, %175 : vector<8x128xi1>, vector<8x128xf32>
    %c1_68 = arith.constant 1 : index
    %184 = memref.load %arg0[%c1_68] : memref<8xi32, #tpu.memory_space<smem>>
    %c1_i32 = arith.constant 1 : i32
    %185 = vector.broadcast %c1_i32 : i32 to vector<8x128xi32>
    %186 = arith.cmpi eq, %174, %185 : vector<8x128xi32>
    %187 = vector.broadcast %184 : i32 to vector<8x128xi32>
    %188 = arith.cmpi eq, %0, %187 : vector<8x128xi32>
    %189 = arith.andi %186, %188 : vector<8x128xi1>
    %cst_69 = arith.constant 1.000000e+00 : f32
    %190 = vector.broadcast %cst_69 : f32 to vector<8x128xf32>
    %191 = arith.select %189, %190, %183 : vector<8x128xi1>, vector<8x128xf32>
    %c2_70 = arith.constant 2 : index
    %192 = memref.load %arg0[%c2_70] : memref<8xi32, #tpu.memory_space<smem>>
    %c2_i32 = arith.constant 2 : i32
    %193 = vector.broadcast %c2_i32 : i32 to vector<8x128xi32>
    %194 = arith.cmpi eq, %174, %193 : vector<8x128xi32>
    %195 = vector.broadcast %192 : i32 to vector<8x128xi32>
    %196 = arith.cmpi eq, %0, %195 : vector<8x128xi32>
    %197 = arith.andi %194, %196 : vector<8x128xi1>
    %cst_71 = arith.constant 1.000000e+00 : f32
    %198 = vector.broadcast %cst_71 : f32 to vector<8x128xf32>
    %199 = arith.select %197, %198, %191 : vector<8x128xi1>, vector<8x128xf32>
    %c3_72 = arith.constant 3 : index
    %200 = memref.load %arg0[%c3_72] : memref<8xi32, #tpu.memory_space<smem>>
    %c3_i32 = arith.constant 3 : i32
    %201 = vector.broadcast %c3_i32 : i32 to vector<8x128xi32>
    %202 = arith.cmpi eq, %174, %201 : vector<8x128xi32>
    %203 = vector.broadcast %200 : i32 to vector<8x128xi32>
    %204 = arith.cmpi eq, %0, %203 : vector<8x128xi32>
    %205 = arith.andi %202, %204 : vector<8x128xi1>
    %cst_73 = arith.constant 1.000000e+00 : f32
    %206 = vector.broadcast %cst_73 : f32 to vector<8x128xf32>
    %207 = arith.select %205, %206, %199 : vector<8x128xi1>, vector<8x128xf32>
    %c4 = arith.constant 4 : index
    %208 = memref.load %arg0[%c4] : memref<8xi32, #tpu.memory_space<smem>>
    %c4_i32_74 = arith.constant 4 : i32
    %209 = vector.broadcast %c4_i32_74 : i32 to vector<8x128xi32>
    %210 = arith.cmpi eq, %174, %209 : vector<8x128xi32>
    %211 = vector.broadcast %208 : i32 to vector<8x128xi32>
    %212 = arith.cmpi eq, %0, %211 : vector<8x128xi32>
    %213 = arith.andi %210, %212 : vector<8x128xi1>
    %cst_75 = arith.constant 1.000000e+00 : f32
    %214 = vector.broadcast %cst_75 : f32 to vector<8x128xf32>
    %215 = arith.select %213, %214, %207 : vector<8x128xi1>, vector<8x128xf32>
    %c5 = arith.constant 5 : index
    %216 = memref.load %arg0[%c5] : memref<8xi32, #tpu.memory_space<smem>>
    %c5_i32 = arith.constant 5 : i32
    %217 = vector.broadcast %c5_i32 : i32 to vector<8x128xi32>
    %218 = arith.cmpi eq, %174, %217 : vector<8x128xi32>
    %219 = vector.broadcast %216 : i32 to vector<8x128xi32>
    %220 = arith.cmpi eq, %0, %219 : vector<8x128xi32>
    %221 = arith.andi %218, %220 : vector<8x128xi1>
    %cst_76 = arith.constant 1.000000e+00 : f32
    %222 = vector.broadcast %cst_76 : f32 to vector<8x128xf32>
    %223 = arith.select %221, %222, %215 : vector<8x128xi1>, vector<8x128xf32>
    %c6 = arith.constant 6 : index
    %224 = memref.load %arg0[%c6] : memref<8xi32, #tpu.memory_space<smem>>
    %c6_i32 = arith.constant 6 : i32
    %225 = vector.broadcast %c6_i32 : i32 to vector<8x128xi32>
    %226 = arith.cmpi eq, %174, %225 : vector<8x128xi32>
    %227 = vector.broadcast %224 : i32 to vector<8x128xi32>
    %228 = arith.cmpi eq, %0, %227 : vector<8x128xi32>
    %229 = arith.andi %226, %228 : vector<8x128xi1>
    %cst_77 = arith.constant 1.000000e+00 : f32
    %230 = vector.broadcast %cst_77 : f32 to vector<8x128xf32>
    %231 = arith.select %229, %230, %223 : vector<8x128xi1>, vector<8x128xf32>
    %c7 = arith.constant 7 : index
    %232 = memref.load %arg0[%c7] : memref<8xi32, #tpu.memory_space<smem>>
    %c7_i32 = arith.constant 7 : i32
    %233 = vector.broadcast %c7_i32 : i32 to vector<8x128xi32>
    %234 = arith.cmpi eq, %174, %233 : vector<8x128xi32>
    %235 = vector.broadcast %232 : i32 to vector<8x128xi32>
    %236 = arith.cmpi eq, %0, %235 : vector<8x128xi32>
    %237 = arith.andi %234, %236 : vector<8x128xi1>
    %cst_78 = arith.constant 1.000000e+00 : f32
    %238 = vector.broadcast %cst_78 : f32 to vector<8x128xf32>
    %239 = arith.select %237, %238, %231 : vector<8x128xi1>, vector<8x128xf32>
    %240 = arith.mulf %239, %166 : vector<8x128xf32>
    %cst_79 = arith.constant dense<0.000000e+00> : vector<8xf32>
    %241 = vector.multi_reduction <add>, %240, %cst_79 [1] : vector<8x128xf32> to vector<8xf32>
    %242 = vector.shape_cast %241 : vector<8xf32> to vector<8x1xf32>
    %cst_80 = arith.constant 1.000000e+00 : f32
    %243 = vector.broadcast %cst_80 : f32 to vector<8x1xf32>
    %244 = arith.addf %242, %243 : vector<8x1xf32>
    %cst_81 = arith.constant 0.000000e+00 : f32
    %245 = vector.broadcast %cst_81 : f32 to vector<8x1xf32>
    %cst_82 = arith.constant 1.000000e+00 : f32
    %246 = vector.broadcast %cst_82 : f32 to vector<8x1xf32>
    %247 = arith.divf %246, %173 : vector<8x1xf32>
    %248 = arith.subf %245, %247 : vector<8x1xf32>
    %cst_83 = arith.constant 1.000000e+00 : f32
    %249 = vector.broadcast %cst_83 : f32 to vector<8x1xf32>
    %250 = arith.addf %173, %249 : vector<8x1xf32>
    %cst_84 = arith.constant 1.000000e+00 : f32
    %251 = vector.broadcast %cst_84 : f32 to vector<8x1xf32>
    %252 = arith.divf %251, %250 : vector<8x1xf32>
    %253 = arith.subf %248, %252 : vector<8x1xf32>
    %cst_85 = arith.constant 1.000000e+00 : f32
    %254 = vector.broadcast %cst_85 : f32 to vector<8x1xf32>
    %255 = arith.addf %250, %254 : vector<8x1xf32>
    %cst_86 = arith.constant 1.000000e+00 : f32
    %256 = vector.broadcast %cst_86 : f32 to vector<8x1xf32>
    %257 = arith.divf %256, %255 : vector<8x1xf32>
    %258 = arith.subf %253, %257 : vector<8x1xf32>
    %cst_87 = arith.constant 1.000000e+00 : f32
    %259 = vector.broadcast %cst_87 : f32 to vector<8x1xf32>
    %260 = arith.addf %255, %259 : vector<8x1xf32>
    %cst_88 = arith.constant 1.000000e+00 : f32
    %261 = vector.broadcast %cst_88 : f32 to vector<8x1xf32>
    %262 = arith.divf %261, %260 : vector<8x1xf32>
    %263 = arith.subf %258, %262 : vector<8x1xf32>
    %cst_89 = arith.constant 1.000000e+00 : f32
    %264 = vector.broadcast %cst_89 : f32 to vector<8x1xf32>
    %265 = arith.addf %260, %264 : vector<8x1xf32>
    %cst_90 = arith.constant 1.000000e+00 : f32
    %266 = vector.broadcast %cst_90 : f32 to vector<8x1xf32>
    %267 = arith.divf %266, %265 : vector<8x1xf32>
    %268 = arith.subf %263, %267 : vector<8x1xf32>
    %cst_91 = arith.constant 1.000000e+00 : f32
    %269 = vector.broadcast %cst_91 : f32 to vector<8x1xf32>
    %270 = arith.addf %265, %269 : vector<8x1xf32>
    %cst_92 = arith.constant 1.000000e+00 : f32
    %271 = vector.broadcast %cst_92 : f32 to vector<8x1xf32>
    %272 = arith.divf %271, %270 : vector<8x1xf32>
    %273 = arith.subf %268, %272 : vector<8x1xf32>
    %cst_93 = arith.constant 1.000000e+00 : f32
    %274 = vector.broadcast %cst_93 : f32 to vector<8x1xf32>
    %275 = arith.addf %270, %274 : vector<8x1xf32>
    %cst_94 = arith.constant 1.000000e+00 : f32
    %276 = vector.broadcast %cst_94 : f32 to vector<8x1xf32>
    %277 = arith.divf %276, %275 : vector<8x1xf32>
    %278 = arith.subf %273, %277 : vector<8x1xf32>
    %cst_95 = arith.constant 1.000000e+00 : f32
    %279 = vector.broadcast %cst_95 : f32 to vector<8x1xf32>
    %280 = arith.addf %275, %279 : vector<8x1xf32>
    %cst_96 = arith.constant 1.000000e+00 : f32
    %281 = vector.broadcast %cst_96 : f32 to vector<8x1xf32>
    %282 = arith.divf %281, %280 : vector<8x1xf32>
    %283 = arith.subf %278, %282 : vector<8x1xf32>
    %cst_97 = arith.constant 1.000000e+00 : f32
    %284 = vector.broadcast %cst_97 : f32 to vector<8x1xf32>
    %285 = arith.addf %280, %284 : vector<8x1xf32>
    %cst_98 = arith.constant 1.000000e+00 : f32
    %286 = vector.broadcast %cst_98 : f32 to vector<8x1xf32>
    %287 = arith.divf %286, %285 : vector<8x1xf32>
    %288 = arith.mulf %287, %287 : vector<8x1xf32>
    %289 = math.log %285 : vector<8x1xf32>
    %cst_99 = arith.constant 5.000000e-01 : f32
    %290 = vector.broadcast %cst_99 : f32 to vector<8x1xf32>
    %291 = arith.mulf %290, %287 : vector<8x1xf32>
    %292 = arith.subf %289, %291 : vector<8x1xf32>
    %cst_100 = arith.constant 0.0039682542 : f32
    %293 = vector.broadcast %cst_100 : f32 to vector<8x1xf32>
    %294 = arith.mulf %288, %293 : vector<8x1xf32>
    %cst_101 = arith.constant 0.00833333377 : f32
    %295 = vector.broadcast %cst_101 : f32 to vector<8x1xf32>
    %296 = arith.subf %295, %294 : vector<8x1xf32>
    %297 = arith.mulf %288, %296 : vector<8x1xf32>
    %cst_102 = arith.constant 0.0833333358 : f32
    %298 = vector.broadcast %cst_102 : f32 to vector<8x1xf32>
    %299 = arith.subf %298, %297 : vector<8x1xf32>
    %300 = arith.mulf %288, %299 : vector<8x1xf32>
    %301 = arith.subf %292, %300 : vector<8x1xf32>
    %302 = arith.addf %283, %301 : vector<8x1xf32>
    %cst_103 = arith.constant 0.000000e+00 : f32
    %303 = vector.broadcast %cst_103 : f32 to vector<8x1xf32>
    %cst_104 = arith.constant 1.000000e+00 : f32
    %304 = vector.broadcast %cst_104 : f32 to vector<8x1xf32>
    %305 = arith.divf %304, %244 : vector<8x1xf32>
    %306 = arith.subf %303, %305 : vector<8x1xf32>
    %cst_105 = arith.constant 1.000000e+00 : f32
    %307 = vector.broadcast %cst_105 : f32 to vector<8x1xf32>
    %308 = arith.addf %244, %307 : vector<8x1xf32>
    %cst_106 = arith.constant 1.000000e+00 : f32
    %309 = vector.broadcast %cst_106 : f32 to vector<8x1xf32>
    %310 = arith.divf %309, %308 : vector<8x1xf32>
    %311 = arith.subf %306, %310 : vector<8x1xf32>
    %cst_107 = arith.constant 1.000000e+00 : f32
    %312 = vector.broadcast %cst_107 : f32 to vector<8x1xf32>
    %313 = arith.addf %308, %312 : vector<8x1xf32>
    %cst_108 = arith.constant 1.000000e+00 : f32
    %314 = vector.broadcast %cst_108 : f32 to vector<8x1xf32>
    %315 = arith.divf %314, %313 : vector<8x1xf32>
    %316 = arith.subf %311, %315 : vector<8x1xf32>
    %cst_109 = arith.constant 1.000000e+00 : f32
    %317 = vector.broadcast %cst_109 : f32 to vector<8x1xf32>
    %318 = arith.addf %313, %317 : vector<8x1xf32>
    %cst_110 = arith.constant 1.000000e+00 : f32
    %319 = vector.broadcast %cst_110 : f32 to vector<8x1xf32>
    %320 = arith.divf %319, %318 : vector<8x1xf32>
    %321 = arith.subf %316, %320 : vector<8x1xf32>
    %cst_111 = arith.constant 1.000000e+00 : f32
    %322 = vector.broadcast %cst_111 : f32 to vector<8x1xf32>
    %323 = arith.addf %318, %322 : vector<8x1xf32>
    %cst_112 = arith.constant 1.000000e+00 : f32
    %324 = vector.broadcast %cst_112 : f32 to vector<8x1xf32>
    %325 = arith.divf %324, %323 : vector<8x1xf32>
    %326 = arith.subf %321, %325 : vector<8x1xf32>
    %cst_113 = arith.constant 1.000000e+00 : f32
    %327 = vector.broadcast %cst_113 : f32 to vector<8x1xf32>
    %328 = arith.addf %323, %327 : vector<8x1xf32>
    %cst_114 = arith.constant 1.000000e+00 : f32
    %329 = vector.broadcast %cst_114 : f32 to vector<8x1xf32>
    %330 = arith.divf %329, %328 : vector<8x1xf32>
    %331 = arith.subf %326, %330 : vector<8x1xf32>
    %cst_115 = arith.constant 1.000000e+00 : f32
    %332 = vector.broadcast %cst_115 : f32 to vector<8x1xf32>
    %333 = arith.addf %328, %332 : vector<8x1xf32>
    %cst_116 = arith.constant 1.000000e+00 : f32
    %334 = vector.broadcast %cst_116 : f32 to vector<8x1xf32>
    %335 = arith.divf %334, %333 : vector<8x1xf32>
    %336 = arith.subf %331, %335 : vector<8x1xf32>
    %cst_117 = arith.constant 1.000000e+00 : f32
    %337 = vector.broadcast %cst_117 : f32 to vector<8x1xf32>
    %338 = arith.addf %333, %337 : vector<8x1xf32>
    %cst_118 = arith.constant 1.000000e+00 : f32
    %339 = vector.broadcast %cst_118 : f32 to vector<8x1xf32>
    %340 = arith.divf %339, %338 : vector<8x1xf32>
    %341 = arith.subf %336, %340 : vector<8x1xf32>
    %cst_119 = arith.constant 1.000000e+00 : f32
    %342 = vector.broadcast %cst_119 : f32 to vector<8x1xf32>
    %343 = arith.addf %338, %342 : vector<8x1xf32>
    %cst_120 = arith.constant 1.000000e+00 : f32
    %344 = vector.broadcast %cst_120 : f32 to vector<8x1xf32>
    %345 = arith.divf %344, %343 : vector<8x1xf32>
    %346 = arith.mulf %345, %345 : vector<8x1xf32>
    %347 = math.log %343 : vector<8x1xf32>
    %cst_121 = arith.constant 5.000000e-01 : f32
    %348 = vector.broadcast %cst_121 : f32 to vector<8x1xf32>
    %349 = arith.mulf %348, %345 : vector<8x1xf32>
    %350 = arith.subf %347, %349 : vector<8x1xf32>
    %cst_122 = arith.constant 0.0039682542 : f32
    %351 = vector.broadcast %cst_122 : f32 to vector<8x1xf32>
    %352 = arith.mulf %346, %351 : vector<8x1xf32>
    %cst_123 = arith.constant 0.00833333377 : f32
    %353 = vector.broadcast %cst_123 : f32 to vector<8x1xf32>
    %354 = arith.subf %353, %352 : vector<8x1xf32>
    %355 = arith.mulf %346, %354 : vector<8x1xf32>
    %cst_124 = arith.constant 0.0833333358 : f32
    %356 = vector.broadcast %cst_124 : f32 to vector<8x1xf32>
    %357 = arith.subf %356, %355 : vector<8x1xf32>
    %358 = arith.mulf %346, %357 : vector<8x1xf32>
    %359 = arith.subf %350, %358 : vector<8x1xf32>
    %360 = arith.addf %341, %359 : vector<8x1xf32>
    %361 = arith.subf %302, %360 : vector<8x1xf32>
    %362 = vector.shape_cast %361 : vector<8x1xf32> to vector<1x8x1xf32>
    %cst_125 = arith.constant dense<0.000000e+00> : vector<1xf32>
    %363 = vector.multi_reduction <add>, %362, %cst_125 [1, 2] : vector<1x8x1xf32> to vector<1xf32>
    %364 = vector.shape_cast %363 : vector<1xf32> to vector<1x1x1xf32>
    %365 = vector.extract %364[0, 0, 0] : f32 from vector<1x1x1xf32>
    %cst_126 = arith.constant 1.250000e-01 : f32
    %366 = arith.mulf %365, %cst_126 : f32
    %cst_127 = arith.constant 0.000000e+00 : f32
    %367 = vector.broadcast %cst_127 : f32 to vector<8x128xf32>
    %368 = vector.broadcast %366 : f32 to vector<8x128xf32>
    %369 = arith.addf %368, %367 : vector<8x128xf32>
    %c4_128 = arith.constant 4 : index
    %c0_129 = arith.constant 0 : index
    %c0_130 = arith.constant 0 : index
    %370 = vector.load %arg7[%c4_128, %c0_129, %c0_130] : memref<5x8x128xf32, #tpu.memory_space<vmem>>, vector<1x8x128xf32>
    %371 = vector.shape_cast %370 : vector<1x8x128xf32> to vector<8x128xf32>
    %372 = vector.shape_cast %369 : vector<8x128xf32> to vector<1x8x128xf32>
    tpu.vector_store %arg7[%c4_128, %c0_129, %c0_130], %372 {strides = array<i32>} : memref<5x8x128xf32, #tpu.memory_space<vmem>>, vector<1x8x128xf32>,
    return
  }
}

</mosaic_0001>

<llo_original>
// kernel: tmc_forward.1
$region0: #{tmc_forward.1}
  #allocation0 [shape = 'u32[]', space=smem, size = 0x4, offset = 0x4, fixed_abs, tag = 'smem constant byte address 0x4 - core index']
  #allocation1 [shape = 'u32[144,128]{1,0:T(1,128)}', space=vmem, size = 0x12000, scoped, tag = 'internal scratch']
  %s0 = inlined_call_operand.vmem [shape: s32[8], index: 0, kind: input, shape index: {}]
  %s1 = inlined_call_operand.vmem [shape: f32[8,128], index: 1, kind: input, shape index: {}]
  %s2 = inlined_call_operand.vmem [shape: f32[8,128], index: 2, kind: input, shape index: {}]
  %s3 = inlined_call_operand.vmem [shape: f32[8,128], index: 3, kind: input, shape index: {}]
  %s4 = inlined_call_operand.hbm [shape: f32[272,128], index: 4, kind: input, shape index: {}]
  %s5 = inlined_call_operand.hbm [shape: f32[272,128], index: 5, kind: input, shape index: {}]
  %s6 = inlined_call_operand.hbm [shape: f32[272,128], index: 6, kind: input, shape index: {}]
  %s7 = inlined_call_operand.vmem [shape: f32[5,8,128], index: 7, kind: output, shape index: {}]
  %s8 = sld [smem:[#allocation0]]
  $region54: #{tmc_forward.1} parent=0
    _
  %s10 = ssub.s32 1, %s8
  %s11 = scalar_select 0, %s10, %s8
  $region1: #{tmc_forward.1} parent=0
    #allocation2 [shape = 'u8[512]{0}', space=smem, size = 0x200, scoped, tag = 'input window, operand 0, single buffered']
    #allocation3 [shape = 's32[1]{0}', space=sflag, size = 0x4, scoped, tag = 'scoped memory for tmc_forward.1']
    #allocation4 [shape = 's32[1]{0}', space=sflag, size = 0x4, scoped, tag = 'scoped memory for tmc_forward.1']
    #allocation5 [shape = 'u8[139264]{0}', space=vmem, size = 0x22000, scoped, tag = 'input window, operand 4, single buffered']
    #allocation6 [shape = 'u8[139264]{0}', space=vmem, size = 0x22000, scoped, tag = 'input window, operand 5, single buffered']
    #allocation7 [shape = 's32[1]{0}', space=sflag, size = 0x4, scoped, tag = 'scoped memory for tmc_forward.1']
    #allocation8 [shape = 'u8[139264]{0}', space=vmem, size = 0x22000, scoped, tag = 'input window, operand 6, single buffered']
    %12 = vsyncpa [#allocation4], 0
    %13 = vsyncpa [#allocation3], 0
    %14 = vsyncpa [#allocation7], 0
    // Predicated region
    $region2: #{tmc_forward.1} parent=1 // pred_check
      _
    $region3: #{tmc_forward.1} parent=1 // pred_check_branch
      %16 = sbr.rel (0) target = $region5
    $region4: #{tmc_forward.1} parent=1 // pred_region
      %s18 = ssub.s32 16, 16
      %19 = vsyncadd [#allocation4], %s18
      %s21 = sshll.u32 %s0, 4
      %s22 = int_to_ptr.vmem [resolvable:$true] %s21
      %24 = dma.vmem_to_smem %s22, 16, [#allocation2], [#allocation4]
    $region5: #{tmc_forward.1} parent=1 // pred_fallthru
      _
    // Predicated region
    $region6: #{tmc_forward.1} parent=1 // pred_check
      _
    $region7: #{tmc_forward.1} parent=1 // pred_check_branch
      %26 = sbr.rel (0) target = $region9
    $region8: #{tmc_forward.1} parent=1 // pred_region
      _
    $region9: #{tmc_forward.1} parent=1 // pred_fallthru
      _
    // Predicated region
    $region10: #{tmc_forward.1} parent=1 // pred_check
      _
    $region11: #{tmc_forward.1} parent=1 // pred_check_branch
      %28 = sbr.rel (0) target = $region13
    $region12: #{tmc_forward.1} parent=1 // pred_region
      _
    $region13: #{tmc_forward.1} parent=1 // pred_fallthru
      _
    // Predicated region
    $region14: #{tmc_forward.1} parent=1 // pred_check
      _
    $region15: #{tmc_forward.1} parent=1 // pred_check_branch
      %30 = sbr.rel (0) target = $region17
    $region16: #{tmc_forward.1} parent=1 // pred_region
      _
    $region17: #{tmc_forward.1} parent=1 // pred_fallthru
      _
    // Predicated region
    $region18: #{tmc_forward.1} parent=1 // pred_check
      _
    $region19: #{tmc_forward.1} parent=1 // pred_check_branch
      %32 = sbr.rel (0) target = $region21
    $region20: #{tmc_forward.1} parent=1 // pred_region
      %s34 = ssub.s32 4352, 4352
      %35 = vsyncadd [#allocation3], %s34
      %s36 = sshll.u32 [#allocation5], 4
      %s37 = int_to_ptr.vmem [resolvable:$true] %s36
      %42 = dma.hbm_to_vmem [thread:$0]  %s4, 4352, %s37, [#allocation3], 128, 128, 8
    $region21: #{tmc_forward.1} parent=1 // pred_fallthru
      _
    // Predicated region
    $region22: #{tmc_forward.1} parent=1 // pred_check
      _
    $region23: #{tmc_forward.1} parent=1 // pred_check_branch
      %44 = sbr.rel (0) target = $region25
    $region24: #{tmc_forward.1} parent=1 // pred_region
      %s46 = ssub.s32 4352, 4352
      %47 = vsyncadd [#allocation7], %s46
      %s48 = sshll.u32 [#allocation6], 4
      %s49 = int_to_ptr.vmem [resolvable:$true] %s48
      %54 = dma.hbm_to_vmem [thread:$0]  %s5, 4352, %s49, [#allocation7], 128, 128, 8
    $region25: #{tmc_forward.1} parent=1 // pred_fallthru
      _
    // Predicated region
    $region26: #{tmc_forward.1} parent=1 // pred_check
      _
    $region27: #{tmc_forward.1} parent=1 // pred_check_branch
      %56 = sbr.rel (0) target = $region29
    $region28: #{tmc_forward.1} parent=1 // pred_region
      %s58 = ssub.s32 4352, 4352
      %59 = vsyncadd [#allocation7], %s58
      %s60 = sshll.u32 [#allocation8], 4
      %s61 = int_to_ptr.vmem [resolvable:$true] %s60
      %66 = dma.hbm_to_vmem [thread:$0]  %s6, 4352, %s61, [#allocation7], 128, 128, 8
    $region29: #{tmc_forward.1} parent=1 // pred_fallthru
      _
    // Predicated region
    $region30: #{tmc_forward.1} parent=1 // pred_check
      _
    $region31: #{tmc_forward.1} parent=1 // pred_check_branch
      %68 = sbr.rel (0) target = $region33
    $region32: #{tmc_forward.1} parent=1 // pred_region
      %69 = dma.done [#allocation4], 16
    $region33: #{tmc_forward.1} parent=1 // pred_fallthru
      _
    // Predicated region
    $region34: #{tmc_forward.1} parent=1 // pred_check
      _
    $region35: #{tmc_forward.1} parent=1 // pred_check_branch
      %71 = sbr.rel (0) target = $region37
    $region36: #{tmc_forward.1} parent=1 // pred_region
      %72 = dma.done [#allocation3], 4352
    $region37: #{tmc_forward.1} parent=1 // pred_fallthru
      _
    // Predicated region
    $region38: #{tmc_forward.1} parent=1 // pred_check
      _
    $region39: #{tmc_forward.1} parent=1 // pred_check_branch
      %74 = sbr.rel (0) target = $region41
    $region40: #{tmc_forward.1} parent=1 // pred_region
      %75 = dma.done [#allocation7], 4352
    $region41: #{tmc_forward.1} parent=1 // pred_fallthru
      _
    // Predicated region
    $region42: #{tmc_forward.1} parent=1 // pred_check
      _
    $region43: #{tmc_forward.1} parent=1 // pred_check_branch
      %77 = sbr.rel (0) target = $region45
    $region44: #{tmc_forward.1} parent=1 // pred_region
      %78 = dma.done [#allocation7], 4352
    $region45: #{tmc_forward.1} parent=1 // pred_fallthru
      _
    %79 = sfence
    %v80 = vlaneseq
    %v81 = vand.u32 %v80, 127
    %vm82 = vcmp.lt.s32.totalorder %v81, 4
    %v83 = vsel %vm82, 1, 0
    %v84 = vcvt.s32.f32 %v83
    %v85 = vld [vmem:[%s1] sm:$0xff]
    %v86 = vld [vmem:[#allocation5] sm:$0xff]
    %v87 = vld [vmem:[#allocation5 + $0x8] sm:$0xff]
    %v88 = vld [vmem:[#allocation5 + $0x10] sm:$0xff]
    %v89 = vld [vmem:[#allocation5 + $0x18] sm:$0xff]
    %v90 = vld [vmem:[#allocation5 + $0x20] sm:$0xff]
    %v91 = vld [vmem:[#allocation5 + $0x28] sm:$0xff]
    %v92 = vld [vmem:[#allocation5 + $0x30] sm:$0xff]
    %v93 = vld [vmem:[#allocation5 + $0x38] sm:$0xff]
    %v94 = vld [vmem:[#allocation5 + $0x40] sm:$0xff]
    %v95 = vld [vmem:[#allocation5 + $0x48] sm:$0xff]
    %v96 = vld [vmem:[#allocation5 + $0x50] sm:$0xff]
    %v97 = vld [vmem:[#allocation5 + $0x58] sm:$0xff]
    %v98 = vld [vmem:[#allocation5 + $0x60] sm:$0xff]
    %v99 = vld [vmem:[#allocation5 + $0x68] sm:$0xff]
    %v100 = vld [vmem:[#allocation5 + $0x70] sm:$0xff]
    %v101 = vld [vmem:[#allocation5 + $0x78] sm:$0xff]
    %v102 = vld [vmem:[#allocation5 + $0x80] sm:$0x1]
    %v103 = vlaneseq
    %v104 = vshrl.u32 %v103, 7
    %v105 = vsub.s32 0, %v104
    %v106 = vrot.slane %v102, %v105
    %107 = vmatprep.subr.mxu0 0.0
    %108 = vmatpush1.msra.mxu0 %v86
    %109 = vmatprep.subr.mxu0 0.0
    %110 = vmatpush1.msra.mxu0 %v87
    %111 = vmatprep.subr.mxu0 0.0
    %112 = vmatpush1.msra.mxu0 %v88
    %113 = vmatprep.subr.mxu0 0.0
    %114 = vmatpush1.msra.mxu0 %v89
    %115 = vmatprep.subr.mxu0 0.0
    %116 = vmatpush1.msra.mxu0 %v90
    %117 = vmatprep.subr.mxu0 0.0
    %118 = vmatpush1.msra.mxu0 %v91
    %119 = vmatprep.subr.mxu0 0.0
    %120 = vmatpush1.msra.mxu0 %v92
    %121 = vmatprep.subr.mxu0 0.0
    %122 = vmatpush1.msra.mxu0 %v93
    %123 = vmatprep.subr.mxu0 0.0
    %124 = vmatpush1.msra.mxu0 %v94
    %125 = vmatprep.subr.mxu0 0.0
    %126 = vmatpush1.msra.mxu0 %v95
    %127 = vmatprep.subr.mxu0 0.0
    %128 = vmatpush1.msra.mxu0 %v96
    %129 = vmatprep.subr.mxu0 0.0
    %130 = vmatpush1.msra.mxu0 %v97
    %131 = vmatprep.subr.mxu0 0.0
    %132 = vmatpush1.msra.mxu0 %v98
    %133 = vmatprep.subr.mxu0 0.0
    %134 = vmatpush1.msra.mxu0 %v99
    %135 = vmatprep.subr.mxu0 0.0
    %136 = vmatpush1.msra.mxu0 %v100
    %137 = vmatprep.subr.mxu0 0.0
    %138 = vmatpush1.msra.mxu0 %v101
    %139 = vmatprep.subr.mxu0 0.0
    %140 = vmatpush1.msra.mxu0 0.0
    %141 = vmatprep.subr.mxu0 0.0
    %142 = vmatpush1.msra.mxu0 0.0
    %143 = vmatprep.subr.mxu0 0.0
    %144 = vmatpush1.msra.mxu0 0.0
    %145 = vmatprep.subr.mxu0 0.0
    %146 = vmatpush1.msra.mxu0 0.0
    %147 = vmatprep.subr.mxu0 0.0
    %148 = vmatpush1.msra.mxu0 0.0
    %149 = vmatprep.subr.mxu0 0.0
    %150 = vmatpush1.msra.mxu0 0.0
    %151 = vmatprep.subr.mxu0 0.0
    %152 = vmatpush1.msra.mxu0 0.0
    %153 = vmatprep.subr.mxu0 0.0
    %154 = vmatpush1.msra.mxu0 0.0
    %155 = vmatprep.subr.mxu0 0.0
    %156 = vmatpush1.msra.mxu0 0.0
    %157 = vmatprep.subr.mxu0 0.0
    %158 = vmatpush1.msra.mxu0 0.0
    %159 = vmatprep.subr.mxu0 0.0
    %160 = vmatpush1.msra.mxu0 0.0
    %161 = vmatprep.subr.mxu0 0.0
    %162 = vmatpush1.msra.mxu0 0.0
    %163 = vmatprep.subr.mxu0 0.0
    %164 = vmatpush1.msra.mxu0 0.0
    %165 = vmatprep.subr.mxu0 0.0
    %166 = vmatpush1.msra.mxu0 0.0
    %167 = vmatprep.subr.mxu0 0.0
    %168 = vmatpush1.msra.mxu0 0.0
    %169 = vmatprep.subr.mxu0 0.0
    %170 = vmatpush1.msra.mxu0 0.0
    %171 = vmatprep.mubr.f32.mxu0 0.0
    %172 = vmatmul.mubr.f32.gmra.mrb[0].mxu0 %v85
    %v173 = vpop.f32.mrb[0].mxu0
    %v174 = vadd.f32 %v106, %v173
    %v175 = vpop.f32.mrb[0].mxu0
    %176 = vdwg.mxu0
    %v177 = vxor.u32 %v174, 2147483648
    %v178 = vmul.f32 %v177, 1.442695
    %v179 = vpow.pop %v178
    %v180 = vadd.f32 %v179, 1.0
    %v181 = vrcp.pop %v180
    %v182 = vmul.f32 1.0, %v181
    %v183 = vld [vmem:[#allocation5 + $0x88] sm:$0xff]
    %v184 = vld [vmem:[#allocation5 + $0x90] sm:$0xff]
    %v185 = vld [vmem:[#allocation5 + $0x98] sm:$0xff]
    %v186 = vld [vmem:[#allocation5 + $0xa0] sm:$0xff]
    %v187 = vld [vmem:[#allocation5 + $0xa8] sm:$0xff]
    %v188 = vld [vmem:[#allocation5 + $0xb0] sm:$0xff]
    %v189 = vld [vmem:[#allocation5 + $0xb8] sm:$0xff]
    %v190 = vld [vmem:[#allocation5 + $0xc0] sm:$0xff]
    %v191 = vld [vmem:[#allocation5 + $0xc8] sm:$0xff]
    %v192 = vld [vmem:[#allocation5 + $0xd0] sm:$0xff]
    %v193 = vld [vmem:[#allocation5 + $0xd8] sm:$0xff]
    %v194 = vld [vmem:[#allocation5 + $0xe0] sm:$0xff]
    %v195 = vld [vmem:[#allocation5 + $0xe8] sm:$0xff]
    %v196 = vld [vmem:[#allocation5 + $0xf0] sm:$0xff]
    %v197 = vld [vmem:[#allocation5 + $0xf8] sm:$0xff]
    %v198 = vld [vmem:[#allocation5 + $0x100] sm:$0xff]
    %v199 = vld [vmem:[#allocation5 + $0x108] sm:$0x1]
    %v200 = vlaneseq
    %v201 = vshrl.u32 %v200, 7
    %v202 = vsub.s32 0, %v201
    %v203 = vrot.slane %v199, %v202
    %204 = vmatprep.subr.mxu0 0.0
    %205 = vmatpush1.msra.mxu0 %v183
    %206 = vmatprep.subr.mxu0 0.0
    %207 = vmatpush1.msra.mxu0 %v184
    %208 = vmatprep.subr.mxu0 0.0
    %209 = vmatpush1.msra.mxu0 %v185
    %210 = vmatprep.subr.mxu0 0.0
    %211 = vmatpush1.msra.mxu0 %v186
    %212 = vmatprep.subr.mxu0 0.0
    %213 = vmatpush1.msra.mxu0 %v187
    %214 = vmatprep.subr.mxu0 0.0
    %215 = vmatpush1.msra.mxu0 %v188
    %216 = vmatprep.subr.mxu0 0.0
    %217 = vmatpush1.msra.mxu0 %v189
    %218 = vmatprep.subr.mxu0 0.0
    %219 = vmatpush1.msra.mxu0 %v190
    %220 = vmatprep.subr.mxu0 0.0
    %221 = vmatpush1.msra.mxu0 %v191
    %222 = vmatprep.subr.mxu0 0.0
    %223 = vmatpush1.msra.mxu0 %v192
    %224 = vmatprep.subr.mxu0 0.0
    %225 = vmatpush1.msra.mxu0 %v193
    %226 = vmatprep.subr.mxu0 0.0
    %227 = vmatpush1.msra.mxu0 %v194
    %228 = vmatprep.subr.mxu0 0.0
    %229 = vmatpush1.msra.mxu0 %v195
    %230 = vmatprep.subr.mxu0 0.0
    %231 = vmatpush1.msra.mxu0 %v196
    %232 = vmatprep.subr.mxu0 0.0
    %233 = vmatpush1.msra.mxu0 %v197
    %234 = vmatprep.subr.mxu0 0.0
    %235 = vmatpush1.msra.mxu0 %v198
    %236 = vmatprep.subr.mxu0 0.0
    %237 = vmatpush1.msra.mxu0 0.0
    %238 = vmatprep.subr.mxu0 0.0
    %239 = vmatpush1.msra.mxu0 0.0
    %240 = vmatprep.subr.mxu0 0.0
    %241 = vmatpush1.msra.mxu0 0.0
    %242 = vmatprep.subr.mxu0 0.0
    %243 = vmatpush1.msra.mxu0 0.0
    %244 = vmatprep.subr.mxu0 0.0
    %245 = vmatpush1.msra.mxu0 0.0
    %246 = vmatprep.subr.mxu0 0.0
    %247 = vmatpush1.msra.mxu0 0.0
    %248 = vmatprep.subr.mxu0 0.0
    %249 = vmatpush1.msra.mxu0 0.0
    %250 = vmatprep.subr.mxu0 0.0
    %251 = vmatpush1.msra.mxu0 0.0
    %252 = vmatprep.subr.mxu0 0.0
    %253 = vmatpush1.msra.mxu0 0.0
    %254 = vmatprep.subr.mxu0 0.0
    %255 = vmatpush1.msra.mxu0 0.0
    %256 = vmatprep.subr.mxu0 0.0
    %257 = vmatpush1.msra.mxu0 0.0
    %258 = vmatprep.subr.mxu0 0.0
    %259 = vmatpush1.msra.mxu0 0.0
    %260 = vmatprep.subr.mxu0 0.0
    %261 = vmatpush1.msra.mxu0 0.0
    %262 = vmatprep.subr.mxu0 0.0
    %263 = vmatpush1.msra.mxu0 0.0
    %264 = vmatprep.subr.mxu0 0.0
    %265 = vmatpush1.msra.mxu0 0.0
    %266 = vmatprep.subr.mxu0 0.0
    %267 = vmatpush1.msra.mxu0 0.0
    %268 = vmatprep.mubr.f32.mxu0 0.0
    %269 = vmatmul.mubr.f32.gmra.mrb[0].mxu0 %v182
    %v270 = vpop.f32.mrb[0].mxu0
    %v271 = vadd.f32 %v203, %v270
    %v272 = vpop.f32.mrb[0].mxu0
    %273 = vdwg.mxu0
    %v274 = vmax.f32 %v271, 0.0
    %vm275 = vcmp.ne.f32.partialorder %v271, %v271
    %v276 = vadd.f32 %v271, 0.0
    %v277 = vand.u32 2147483647, %v271
    %v278 = vsub.f32 0.0, %v277
    %v279 = vmul.f32 %v278, 1.442695
    %v280 = vpow.pop %v279
    %v281 = vadd.f32 %v280, 1.0
    %v282 = vlog2.pop %v281
    %v283 = vmul.f32 %v282, 0.6931472
    %v284 = vmul.f32 -0.5, %v280
    %v285 = vadd.f32 %v284, 1.0
    %v286 = vmul.f32 %v285, %v280
    %v287 = vand.u32 2147483647, %v280
    %vm288 = vcmp.lt.f32.partialorder %v287, 0.0004427343
    %v289 = vsel %vm288, %v286, %v283
    %v290 = vadd.f32 %v274, %v289
    %v291 = vsel %vm275, %v276, %v290
    %v292 = vmul.f32 %v291, %v84
    %293 = vst [vmem:[%s7] sm:$0xff] %v292
    %v294 = vld [vmem:[%s2] sm:$0xff]
    %v295 = vld [vmem:[#allocation6] sm:$0xff]
    %v296 = vld [vmem:[#allocation6 + $0x8] sm:$0xff]
    %v297 = vld [vmem:[#allocation6 + $0x10] sm:$0xff]
    %v298 = vld [vmem:[#allocation6 + $0x18] sm:$0xff]
    %v299 = vld [vmem:[#allocation6 + $0x20] sm:$0xff]
    %v300 = vld [vmem:[#allocation6 + $0x28] sm:$0xff]
    %v301 = vld [vmem:[#allocation6 + $0x30] sm:$0xff]
    %v302 = vld [vmem:[#allocation6 + $0x38] sm:$0xff]
    %v303 = vld [vmem:[#allocation6 + $0x40] sm:$0xff]
    %v304 = vld [vmem:[#allocation6 + $0x48] sm:$0xff]
    %v305 = vld [vmem:[#allocation6 + $0x50] sm:$0xff]
    %v306 = vld [vmem:[#allocation6 + $0x58] sm:$0xff]
    %v307 = vld [vmem:[#allocation6 + $0x60] sm:$0xff]
    %v308 = vld [vmem:[#allocation6 + $0x68] sm:$0xff]
    %v309 = vld [vmem:[#allocation6 + $0x70] sm:$0xff]
    %v310 = vld [vmem:[#allocation6 + $0x78] sm:$0xff]
    %v311 = vld [vmem:[#allocation6 + $0x80] sm:$0x1]
    %v312 = vlaneseq
    %v313 = vshrl.u32 %v312, 7
    %v314 = vsub.s32 0, %v313
    %v315 = vrot.slane %v311, %v314
    %316 = vmatprep.subr.mxu0 0.0
    %317 = vmatpush1.msra.mxu0 %v295
    %318 = vmatprep.subr.mxu0 0.0
    %319 = vmatpush1.msra.mxu0 %v296
    %320 = vmatprep.subr.mxu0 0.0
    %321 = vmatpush1.msra.mxu0 %v297
    %322 = vmatprep.subr.mxu0 0.0
    %323 = vmatpush1.msra.mxu0 %v298
    %324 = vmatprep.subr.mxu0 0.0
    %325 = vmatpush1.msra.mxu0 %v299
    %326 = vmatprep.subr.mxu0 0.0
    %327 = vmatpush1.msra.mxu0 %v300
    %328 = vmatprep.subr.mxu0 0.0
    %329 = vmatpush1.msra.mxu0 %v301
    %330 = vmatprep.subr.mxu0 0.0
    %331 = vmatpush1.msra.mxu0 %v302
    %332 = vmatprep.subr.mxu0 0.0
    %333 = vmatpush1.msra.mxu0 %v303
    %334 = vmatprep.subr.mxu0 0.0
    %335 = vmatpush1.msra.mxu0 %v304
    %336 = vmatprep.subr.mxu0 0.0
    %337 = vmatpush1.msra.mxu0 %v305
    %338 = vmatprep.subr.mxu0 0.0
    %339 = vmatpush1.msra.mxu0 %v306
    %340 = vmatprep.subr.mxu0 0.0
    %341 = vmatpush1.msra.mxu0 %v307
    %342 = vmatprep.subr.mxu0 0.0
    %343 = vmatpush1.msra.mxu0 %v308
    %344 = vmatprep.subr.mxu0 0.0
    %345 = vmatpush1.msra.mxu0 %v309
    %346 = vmatprep.subr.mxu0 0.0
    %347 = vmatpush1.msra.mxu0 %v310
    %348 = vmatprep.subr.mxu0 0.0
    %349 = vmatpush1.msra.mxu0 0.0
    %350 = vmatprep.subr.mxu0 0.0
    %351 = vmatpush1.msra.mxu0 0.0
    %352 = vmatprep.subr.mxu0 0.0
    %353 = vmatpush1.msra.mxu0 0.0
    %354 = vmatprep.subr.mxu0 0.0
    %355 = vmatpush1.msra.mxu0 0.0
    %356 = vmatprep.subr.mxu0 0.0
    %357 = vmatpush1.msra.mxu0 0.0
    %358 = vmatprep.subr.mxu0 0.0
    %359 = vmatpush1.msra.mxu0 0.0
    %360 = vmatprep.subr.mxu0 0.0
    %361 = vmatpush1.msra.mxu0 0.0
    %362 = vmatprep.subr.mxu0 0.0
    %363 = vmatpush1.msra.mxu0 0.0
    %364 = vmatprep.subr.mxu0 0.0
    %365 = vmatpush1.msra.mxu0 0.0
    %366 = vmatprep.subr.mxu0 0.0
    %367 = vmatpush1.msra.mxu0 0.0
    %368 = vmatprep.subr.mxu0 0.0
    %369 = vmatpush1.msra.mxu0 0.0
    %370 = vmatprep.subr.mxu0 0.0
    %371 = vmatpush1.msra.mxu0 0.0
    %372 = vmatprep.subr.mxu0 0.0
    %373 = vmatpush1.msra.mxu0 0.0
    %374 = vmatprep.subr.mxu0 0.0
    %375 = vmatpush1.msra.mxu0 0.0
    %376 = vmatprep.subr.mxu0 0.0
    %377 = vmatpush1.msra.mxu0 0.0
    %378 = vmatprep.subr.mxu0 0.0
    %379 = vmatpush1.msra.mxu0 0.0
    %380 = vmatprep.mubr.f32.mxu0 0.0
    %381 = vmatmul.mubr.f32.gmra.mrb[0].mxu0 %v294
    %v382 = vpop.f32.mrb[0].mxu0
    %v383 = vadd.f32 %v315, %v382
    %v384 = vpop.f32.mrb[0].mxu0
    %385 = vdwg.mxu0
    %v386 = vxor.u32 %v383, 2147483648
    %v387 = vmul.f32 %v386, 1.442695
    %v388 = vpow.pop %v387
    %v389 = vadd.f32 %v388, 1.0
    %v390 = vrcp.pop %v389
    %v391 = vmul.f32 1.0, %v390
    %v392 = vld [vmem:[#allocation6 + $0x88] sm:$0xff]
    %v393 = vld [vmem:[#allocation6 + $0x90] sm:$0xff]
    %v394 = vld [vmem:[#allocation6 + $0x98] sm:$0xff]
    %v395 = vld [vmem:[#allocation6 + $0xa0] sm:$0xff]
    %v396 = vld [vmem:[#allocation6 + $0xa8] sm:$0xff]
    %v397 = vld [vmem:[#allocation6 + $0xb0] sm:$0xff]
    %v398 = vld [vmem:[#allocation6 + $0xb8] sm:$0xff]
    %v399 = vld [vmem:[#allocation6 + $0xc0] sm:$0xff]
    %v400 = vld [vmem:[#allocation6 + $0xc8] sm:$0xff]
    %v401 = vld [vmem:[#allocation6 + $0xd0] sm:$0xff]
    %v402 = vld [vmem:[#allocation6 + $0xd8] sm:$0xff]
    %v403 = vld [vmem:[#allocation6 + $0xe0] sm:$0xff]
    %v404 = vld [vmem:[#allocation6 + $0xe8] sm:$0xff]
    %v405 = vld [vmem:[#allocation6 + $0xf0] sm:$0xff]
    %v406 = vld [vmem:[#allocation6 + $0xf8] sm:$0xff]
    %v407 = vld [vmem:[#allocation6 + $0x100] sm:$0xff]
    %v408 = vld [vmem:[#allocation6 + $0x108] sm:$0x1]
    %v409 = vlaneseq
    %v410 = vshrl.u32 %v409, 7
    %v411 = vsub.s32 0, %v410
    %v412 = vrot.slane %v408, %v411
    %413 = vmatprep.subr.mxu0 0.0
    %414 = vmatpush1.msra.mxu0 %v392
    %415 = vmatprep.subr.mxu0 0.0
    %416 = vmatpush1.msra.mxu0 %v393
    %417 = vmatprep.subr.mxu0 0.0
    %418 = vmatpush1.msra.mxu0 %v394
    %419 = vmatprep.subr.mxu0 0.0
    %420 = vmatpush1.msra.mxu0 %v395
    %421 = vmatprep.subr.mxu0 0.0
    %422 = vmatpush1.msra.mxu0 %v396
    %423 = vmatprep.subr.mxu0 0.0
    %424 = vmatpush1.msra.mxu0 %v397
    %425 = vmatprep.subr.mxu0 0.0
    %426 = vmatpush1.msra.mxu0 %v398
    %427 = vmatprep.subr.mxu0 0.0
    %428 = vmatpush1.msra.mxu0 %v399
    %429 = vmatprep.subr.mxu0 0.0
    %430 = vmatpush1.msra.mxu0 %v400
    %431 = vmatprep.subr.mxu0 0.0
    %432 = vmatpush1.msra.mxu0 %v401
    %433 = vmatprep.subr.mxu0 0.0
    %434 = vmatpush1.msra.mxu0 %v402
    %435 = vmatprep.subr.mxu0 0.0
    %436 = vmatpush1.msra.mxu0 %v403
    %437 = vmatprep.subr.mxu0 0.0
    %438 = vmatpush1.msra.mxu0 %v404
    %439 = vmatprep.subr.mxu0 0.0
    %440 = vmatpush1.msra.mxu0 %v405
    %441 = vmatprep.subr.mxu0 0.0
    %442 = vmatpush1.msra.mxu0 %v406
    %443 = vmatprep.subr.mxu0 0.0
    %444 = vmatpush1.msra.mxu0 %v407
    %445 = vmatprep.subr.mxu0 0.0
    %446 = vmatpush1.msra.mxu0 0.0
    %447 = vmatprep.subr.mxu0 0.0
    %448 = vmatpush1.msra.mxu0 0.0
    %449 = vmatprep.subr.mxu0 0.0
    %450 = vmatpush1.msra.mxu0 0.0
    %451 = vmatprep.subr.mxu0 0.0
    %452 = vmatpush1.msra.mxu0 0.0
    %453 = vmatprep.subr.mxu0 0.0
    %454 = vmatpush1.msra.mxu0 0.0
    %455 = vmatprep.subr.mxu0 0.0
    %456 = vmatpush1.msra.mxu0 0.0
    %457 = vmatprep.subr.mxu0 0.0
    %458 = vmatpush1.msra.mxu0 0.0
    %459 = vmatprep.subr.mxu0 0.0
    %460 = vmatpush1.msra.mxu0 0.0
    %461 = vmatprep.subr.mxu0 0.0
    %462 = vmatpush1.msra.mxu0 0.0
    %463 = vmatprep.subr.mxu0 0.0
    %464 = vmatpush1.msra.mxu0 0.0
    %465 = vmatprep.subr.mxu0 0.0
    %466 = vmatpush1.msra.mxu0 0.0
    %467 = vmatprep.subr.mxu0 0.0
    %468 = vmatpush1.msra.mxu0 0.0
    %469 = vmatprep.subr.mxu0 0.0
    %470 = vmatpush1.msra.mxu0 0.0
    %471 = vmatprep.subr.mxu0 0.0
    %472 = vmatpush1.msra.mxu0 0.0
    %473 = vmatprep.subr.mxu0 0.0
    %474 = vmatpush1.msra.mxu0 0.0
    %475 = vmatprep.subr.mxu0 0.0
    %476 = vmatpush1.msra.mxu0 0.0
    %477 = vmatprep.mubr.f32.mxu0 0.0
    %478 = vmatmul.mubr.f32.gmra.mrb[0].mxu0 %v391
    %v479 = vpop.f32.mrb[0].mxu0
    %v480 = vadd.f32 %v412, %v479
    %v481 = vpop.f32.mrb[0].mxu0
    %482 = vdwg.mxu0
    %v483 = vmax.f32 %v480, 0.0
    %vm484 = vcmp.ne.f32.partialorder %v480, %v480
    %v485 = vadd.f32 %v480, 0.0
    %v486 = vand.u32 2147483647, %v480
    %v487 = vsub.f32 0.0, %v486
    %v488 = vmul.f32 %v487, 1.442695
    %v489 = vpow.pop %v488
    %v490 = vadd.f32 %v489, 1.0
    %v491 = vlog2.pop %v490
    %v492 = vmul.f32 %v491, 0.6931472
    %v493 = vmul.f32 -0.5, %v489
    %v494 = vadd.f32 %v493, 1.0
    %v495 = vmul.f32 %v494, %v489
    %v496 = vand.u32 2147483647, %v489
    %vm497 = vcmp.lt.f32.partialorder %v496, 0.0004427343
    %v498 = vsel %vm497, %v495, %v492
    %v499 = vadd.f32 %v483, %v498
    %v500 = vsel %vm484, %v485, %v499
    %v501 = vmul.f32 %v500, %v84
    %s502 = scalar_lea.vmem %s7, 8
    %503 = vst [vmem:[%s502] sm:$0xff] %v501
    %v504 = vld [vmem:[%s3] sm:$0xff]
    %v505 = vld [vmem:[#allocation8] sm:$0xff]
    %v506 = vld [vmem:[#allocation8 + $0x8] sm:$0xff]
    %v507 = vld [vmem:[#allocation8 + $0x10] sm:$0xff]
    %v508 = vld [vmem:[#allocation8 + $0x18] sm:$0xff]
    %v509 = vld [vmem:[#allocation8 + $0x20] sm:$0xff]
    %v510 = vld [vmem:[#allocation8 + $0x28] sm:$0xff]
    %v511 = vld [vmem:[#allocation8 + $0x30] sm:$0xff]
    %v512 = vld [vmem:[#allocation8 + $0x38] sm:$0xff]
    %v513 = vld [vmem:[#allocation8 + $0x40] sm:$0xff]
    %v514 = vld [vmem:[#allocation8 + $0x48] sm:$0xff]
    %v515 = vld [vmem:[#allocation8 + $0x50] sm:$0xff]
    %v516 = vld [vmem:[#allocation8 + $0x58] sm:$0xff]
    %v517 = vld [vmem:[#allocation8 + $0x60] sm:$0xff]
    %v518 = vld [vmem:[#allocation8 + $0x68] sm:$0xff]
    %v519 = vld [vmem:[#allocation8 + $0x70] sm:$0xff]
    %v520 = vld [vmem:[#allocation8 + $0x78] sm:$0xff]
    %v521 = vld [vmem:[#allocation8 + $0x80] sm:$0x1]
    %v522 = vlaneseq
    %v523 = vshrl.u32 %v522, 7
    %v524 = vsub.s32 0, %v523
    %v525 = vrot.slane %v521, %v524
    %526 = vmatprep.subr.mxu0 0.0
    %527 = vmatpush1.msra.mxu0 %v505
    %528 = vmatprep.subr.mxu0 0.0
    %529 = vmatpush1.msra.mxu0 %v506
    %530 = vmatprep.subr.mxu0 0.0
    %531 = vmatpush1.msra.mxu0 %v507
    %532 = vmatprep.subr.mxu0 0.0
    %533 = vmatpush1.msra.mxu0 %v508
    %534 = vmatprep.subr.mxu0 0.0
    %535 = vmatpush1.msra.mxu0 %v509
    %536 = vmatprep.subr.mxu0 0.0
    %537 = vmatpush1.msra.mxu0 %v510
    %538 = vmatprep.subr.mxu0 0.0
    %539 = vmatpush1.msra.mxu0 %v511
    %540 = vmatprep.subr.mxu0 0.0
    %541 = vmatpush1.msra.mxu0 %v512
    %542 = vmatprep.subr.mxu0 0.0
    %543 = vmatpush1.msra.mxu0 %v513
    %544 = vmatprep.subr.mxu0 0.0
    %545 = vmatpush1.msra.mxu0 %v514
    %546 = vmatprep.subr.mxu0 0.0
    %547 = vmatpush1.msra.mxu0 %v515
    %548 = vmatprep.subr.mxu0 0.0
    %549 = vmatpush1.msra.mxu0 %v516
    %550 = vmatprep.subr.mxu0 0.0
    %551 = vmatpush1.msra.mxu0 %v517
    %552 = vmatprep.subr.mxu0 0.0
    %553 = vmatpush1.msra.mxu0 %v518
    %554 = vmatprep.subr.mxu0 0.0
    %555 = vmatpush1.msra.mxu0 %v519
    %556 = vmatprep.subr.mxu0 0.0
    %557 = vmatpush1.msra.mxu0 %v520
    %558 = vmatprep.subr.mxu0 0.0
    %559 = vmatpush1.msra.mxu0 0.0
    %560 = vmatprep.subr.mxu0 0.0
    %561 = vmatpush1.msra.mxu0 0.0
    %562 = vmatprep.subr.mxu0 0.0
    %563 = vmatpush1.msra.mxu0 0.0
    %564 = vmatprep.subr.mxu0 0.0
    %565 = vmatpush1.msra.mxu0 0.0
    %566 = vmatprep.subr.mxu0 0.0
    %567 = vmatpush1.msra.mxu0 0.0
    %568 = vmatprep.subr.mxu0 0.0
    %569 = vmatpush1.msra.mxu0 0.0
    %570 = vmatprep.subr.mxu0 0.0
    %571 = vmatpush1.msra.mxu0 0.0
    %572 = vmatprep.subr.mxu0 0.0
    %573 = vmatpush1.msra.mxu0 0.0
    %574 = vmatprep.subr.mxu0 0.0
    %575 = vmatpush1.msra.mxu0 0.0
    %576 = vmatprep.subr.mxu0 0.0
    %577 = vmatpush1.msra.mxu0 0.0
    %578 = vmatprep.subr.mxu0 0.0
    %579 = vmatpush1.msra.mxu0 0.0
    %580 = vmatprep.subr.mxu0 0.0
    %581 = vmatpush1.msra.mxu0 0.0
    %582 = vmatprep.subr.mxu0 0.0
    %583 = vmatpush1.msra.mxu0 0.0
    %584 = vmatprep.subr.mxu0 0.0
    %585 = vmatpush1.msra.mxu0 0.0
    %586 = vmatprep.subr.mxu0 0.0
    %587 = vmatpush1.msra.mxu0 0.0
    %588 = vmatprep.subr.mxu0 0.0
    %589 = vmatpush1.msra.mxu0 0.0
    %590 = vmatprep.mubr.f32.mxu0 0.0
    %591 = vmatmul.mubr.f32.gmra.mrb[0].mxu0 %v504
    %v592 = vpop.f32.mrb[0].mxu0
    %v593 = vadd.f32 %v525, %v592
    %v594 = vpop.f32.mrb[0].mxu0
    %595 = vdwg.mxu0
    %v596 = vxor.u32 %v593, 2147483648
    %v597 = vmul.f32 %v596, 1.442695
    %v598 = vpow.pop %v597
    %v599 = vadd.f32 %v598, 1.0
    %v600 = vrcp.pop %v599
    %v601 = vmul.f32 1.0, %v600
    %v602 = vld [vmem:[#allocation8 + $0x88] sm:$0xff]
    %v603 = vld [vmem:[#allocation8 + $0x90] sm:$0xff]
    %v604 = vld [vmem:[#allocation8 + $0x98] sm:$0xff]
    %v605 = vld [vmem:[#allocation8 + $0xa0] sm:$0xff]
    %v606 = vld [vmem:[#allocation8 + $0xa8] sm:$0xff]
    %v607 = vld [vmem:[#allocation8 + $0xb0] sm:$0xff]
    %v608 = vld [vmem:[#allocation8 + $0xb8] sm:$0xff]
    %v609 = vld [vmem:[#allocation8 + $0xc0] sm:$0xff]
    %v610 = vld [vmem:[#allocation8 + $0xc8] sm:$0xff]
    %v611 = vld [vmem:[#allocation8 + $0xd0] sm:$0xff]
    %v612 = vld [vmem:[#allocation8 + $0xd8] sm:$0xff]
    %v613 = vld [vmem:[#allocation8 + $0xe0] sm:$0xff]
    %v614 = vld [vmem:[#allocation8 + $0xe8] sm:$0xff]
    %v615 = vld [vmem:[#allocation8 + $0xf0] sm:$0xff]
    %v616 = vld [vmem:[#allocation8 + $0xf8] sm:$0xff]
    %v617 = vld [vmem:[#allocation8 + $0x100] sm:$0xff]
    %v618 = vld [vmem:[#allocation8 + $0x108] sm:$0x1]
    %v619 = vlaneseq
    %v620 = vshrl.u32 %v619, 7
    %v621 = vsub.s32 0, %v620
    %v622 = vrot.slane %v618, %v621
    %623 = vmatprep.subr.mxu0 0.0
    %624 = vmatpush1.msra.mxu0 %v602
    %625 = vmatprep.subr.mxu0 0.0
    %626 = vmatpush1.msra.mxu0 %v603
    %627 = vmatprep.subr.mxu0 0.0
    %628 = vmatpush1.msra.mxu0 %v604
    %629 = vmatprep.subr.mxu0 0.0
    %630 = vmatpush1.msra.mxu0 %v605
    %631 = vmatprep.subr.mxu0 0.0
    %632 = vmatpush1.msra.mxu0 %v606
    %633 = vmatprep.subr.mxu0 0.0
    %634 = vmatpush1.msra.mxu0 %v607
    %635 = vmatprep.subr.mxu0 0.0
    %636 = vmatpush1.msra.mxu0 %v608
    %637 = vmatprep.subr.mxu0 0.0
    %638 = vmatpush1.msra.mxu0 %v609
    %639 = vmatprep.subr.mxu0 0.0
    %640 = vmatpush1.msra.mxu0 %v610
    %641 = vmatprep.subr.mxu0 0.0
    %642 = vmatpush1.msra.mxu0 %v611
    %643 = vmatprep.subr.mxu0 0.0
    %644 = vmatpush1.msra.mxu0 %v612
    %645 = vmatprep.subr.mxu0 0.0
    %646 = vmatpush1.msra.mxu0 %v613
    %647 = vmatprep.subr.mxu0 0.0
    %648 = vmatpush1.msra.mxu0 %v614
    %649 = vmatprep.subr.mxu0 0.0
    %650 = vmatpush1.msra.mxu0 %v615
    %651 = vmatprep.subr.mxu0 0.0
    %652 = vmatpush1.msra.mxu0 %v616
    %653 = vmatprep.subr.mxu0 0.0
    %654 = vmatpush1.msra.mxu0 %v617
    %655 = vmatprep.subr.mxu0 0.0
    %656 = vmatpush1.msra.mxu0 0.0
    %657 = vmatprep.subr.mxu0 0.0
    %658 = vmatpush1.msra.mxu0 0.0
    %659 = vmatprep.subr.mxu0 0.0
    %660 = vmatpush1.msra.mxu0 0.0
    %661 = vmatprep.subr.mxu0 0.0
    %662 = vmatpush1.msra.mxu0 0.0
    %663 = vmatprep.subr.mxu0 0.0
    %664 = vmatpush1.msra.mxu0 0.0
    %665 = vmatprep.subr.mxu0 0.0
    %666 = vmatpush1.msra.mxu0 0.0
    %667 = vmatprep.subr.mxu0 0.0
    %668 = vmatpush1.msra.mxu0 0.0
    %669 = vmatprep.subr.mxu0 0.0
    %670 = vmatpush1.msra.mxu0 0.0
    %671 = vmatprep.subr.mxu0 0.0
    %672 = vmatpush1.msra.mxu0 0.0
    %673 = vmatprep.subr.mxu0 0.0
    %674 = vmatpush1.msra.mxu0 0.0
    %675 = vmatprep.subr.mxu0 0.0
    %676 = vmatpush1.msra.mxu0 0.0
    %677 = vmatprep.subr.mxu0 0.0
    %678 = vmatpush1.msra.mxu0 0.0
    %679 = vmatprep.subr.mxu0 0.0
    %680 = vmatpush1.msra.mxu0 0.0
    %681 = vmatprep.subr.mxu0 0.0
    %682 = vmatpush1.msra.mxu0 0.0
    %683 = vmatprep.subr.mxu0 0.0
    %684 = vmatpush1.msra.mxu0 0.0
    %685 = vmatprep.subr.mxu0 0.0
    %686 = vmatpush1.msra.mxu0 0.0
    %687 = vmatprep.mubr.f32.mxu0 0.0
    %688 = vmatmul.mubr.f32.gmra.mrb[0].mxu0 %v601
    %v689 = vpop.f32.mrb[0].mxu0
    %v690 = vadd.f32 %v622, %v689
    %v691 = vpop.f32.mrb[0].mxu0
    %692 = vdwg.mxu0
    %v693 = vmax.f32 %v690, 0.0
    %vm694 = vcmp.ne.f32.partialorder %v690, %v690
    %v695 = vadd.f32 %v690, 0.0
    %v696 = vand.u32 2147483647, %v690
    %v697 = vsub.f32 0.0, %v696
    %v698 = vmul.f32 %v697, 1.442695
    %v699 = vpow.pop %v698
    %v700 = vadd.f32 %v699, 1.0
    %v701 = vlog2.pop %v700
    %v702 = vmul.f32 %v701, 0.6931472
    %v703 = vmul.f32 -0.5, %v699
    %v704 = vadd.f32 %v703, 1.0
    %v705 = vmul.f32 %v704, %v699
    %v706 = vand.u32 2147483647, %v699
    %vm707 = vcmp.lt.f32.partialorder %v706, 0.0004427343
    %v708 = vsel %vm707, %v705, %v702
    %v709 = vadd.f32 %v693, %v708
    %v710 = vsel %vm694, %v695, %v709
    %v711 = vmul.f32 %v710, %v84
    %s712 = scalar_lea.vmem %s7, 16
    %713 = vst [vmem:[%s712] sm:$0xff] %v711
    %714 = vadd.xlane.f32.xlu0 %v292
    %v715 = vpop.xlane.xlu0 %714
    %v716 = vadd.f32 %v715, 4.0
    %717 = vadd.xlane.f32.xlu0 %v501
    %v718 = vpop.xlane.xlu0 %717
    %v719 = vadd.f32 %v718, 4.0
    %v720 = vrcp.pop %v716
    %v721 = vrcp.pop %v719
    %v722 = vmul.f32 %v292, %v720
    %v723 = vmul.f32 %v501, %v721
    %v724 = vmul.f32 %v720, 4.0
    %v725 = vmul.f32 %v721, 4.0
    %v726 = vmul.f32 %v722, %v723
    %v727 = vmul.f32 %v722, %v725
    %v728 = vadd.f32 %v726, %v727
    %v729 = vmul.f32 %v723, %v724
    %v730 = vadd.f32 %v728, %v729
    %v731 = vmul.f32 %v716, %v719
    %v732 = vmul.f32 %v731, 0.25
    %v733 = vmul.f32 %v730, %v732
    %734 = vadd.xlane.f32.xlu0 %v733
    %v735 = vpop.xlane.xlu0 %734
    %v736 = vadd.f32 %v735, 4.0
    %737 = vadd.xlane.f32.xlu0 %v711
    %v738 = vpop.xlane.xlu0 %737
    %v739 = vadd.f32 %v738, 4.0
    %v740 = vrcp.pop %v736
    %v741 = vrcp.pop %v739
    %v742 = vmul.f32 %v733, %v740
    %v743 = vmul.f32 %v711, %v741
    %v744 = vmul.f32 %v740, 4.0
    %v745 = vmul.f32 %v741, 4.0
    %v746 = vmul.f32 %v742, %v743
    %v747 = vmul.f32 %v742, %v745
    %v748 = vadd.f32 %v746, %v747
    %v749 = vmul.f32 %v743, %v744
    %v750 = vadd.f32 %v748, %v749
    %v751 = vmul.f32 %v736, %v739
    %v752 = vmul.f32 %v751, 0.25
    %v753 = vmul.f32 %v750, %v752
    %s754 = scalar_lea.vmem %s7, 24
    %755 = vst [vmem:[%s754] sm:$0xff] %v753
    %756 = vadd.xlane.f32.xlu0 %v753
    %v757 = vpop.xlane.xlu0 %756
    %v758 = vadd.f32 %v757, 4.0
    %v759 = vlaneseq
    %v760 = vshrl.u32 %v759, 7
    %s761 = sld [smem:[#allocation2]]
    %vm762 = vcmp.eq.s32.totalorder %v760, 0
    %v763 = vstv %s761
    %vm764 = vcmp.eq.s32.totalorder %v81, %v763
    %vm765 = vmand %vm762, %vm764
    %v766 = vsel %vm765, 1.0, 0.0
    %s767 = sld [smem:[#allocation2 + $0x1]]
    %vm768 = vcmp.eq.s32.totalorder %v760, 1
    %v769 = vstv %s767
    %vm770 = vcmp.eq.s32.totalorder %v81, %v769
    %vm771 = vmand %vm768, %vm770
    %v772 = vsel %vm771, 1.0, %v766
    %s773 = sld [smem:[#allocation2 + $0x2]]
    %vm774 = vcmp.eq.s32.totalorder %v760, 2
    %v775 = vstv %s773
    %vm776 = vcmp.eq.s32.totalorder %v81, %v775
    %vm777 = vmand %vm774, %vm776
    %v778 = vsel %vm777, 1.0, %v772
    %s779 = sld [smem:[#allocation2 + $0x3]]
    %vm780 = vcmp.eq.s32.totalorder %v760, 3
    %v781 = vstv %s779
    %vm782 = vcmp.eq.s32.totalorder %v81, %v781
    %vm783 = vmand %vm780, %vm782
    %v784 = vsel %vm783, 1.0, %v778
    %s785 = sld [smem:[#allocation2 + $0x4]]
    %vm786 = vcmp.eq.s32.totalorder %v760, 4
    %v787 = vstv %s785
    %vm788 = vcmp.eq.s32.totalorder %v81, %v787
    %vm789 = vmand %vm786, %vm788
    %v790 = vsel %vm789, 1.0, %v784
    %s791 = sld [smem:[#allocation2 + $0x5]]
    %vm792 = vcmp.eq.s32.totalorder %v760, 5
    %v793 = vstv %s791
    %vm794 = vcmp.eq.s32.totalorder %v81, %v793
    %vm795 = vmand %vm792, %vm794
    %v796 = vsel %vm795, 1.0, %v790
    %s797 = sld [smem:[#allocation2 + $0x6]]
    %vm798 = vcmp.eq.s32.totalorder %v760, 6
    %v799 = vstv %s797
    %vm800 = vcmp.eq.s32.totalorder %v81, %v799
    %vm801 = vmand %vm798, %vm800
    %v802 = vsel %vm801, 1.0, %v796
    %s803 = sld [smem:[#allocation2 + $0x7]]
    %vm804 = vcmp.eq.s32.totalorder %v760, 7
    %v805 = vstv %s803
    %vm806 = vcmp.eq.s32.totalorder %v81, %v805
    %vm807 = vmand %vm804, %vm806
    %v808 = vsel %vm807, 1.0, %v802
    %v809 = vmul.f32 %v808, %v753
    %810 = vadd.xlane.f32.xlu0 %v809
    %v811 = vpop.xlane.xlu0 %810
    %v812 = vadd.f32 %v811, 1.0
    %v813 = vrcp.pop %v758
    %v814 = vmul.f32 1.0, %v813
    %v815 = vsub.f32 0.0, %v814
    %v816 = vadd.f32 %v758, 1.0
    %v817 = vrcp.pop %v816
    %v818 = vmul.f32 1.0, %v817
    %v819 = vsub.f32 %v815, %v818
    %v820 = vadd.f32 %v816, 1.0
    %v821 = vrcp.pop %v820
    %v822 = vmul.f32 1.0, %v821
    %v823 = vsub.f32 %v819, %v822
    %v824 = vadd.f32 %v820, 1.0
    %v825 = vrcp.pop %v824
    %v826 = vmul.f32 1.0, %v825
    %v827 = vsub.f32 %v823, %v826
    %v828 = vadd.f32 %v824, 1.0
    %v829 = vrcp.pop %v828
    %v830 = vmul.f32 1.0, %v829
    %v831 = vsub.f32 %v827, %v830
    %v832 = vadd.f32 %v828, 1.0
    %v833 = vrcp.pop %v832
    %v834 = vmul.f32 1.0, %v833
    %v835 = vsub.f32 %v831, %v834
    %v836 = vadd.f32 %v832, 1.0
    %v837 = vrcp.pop %v836
    %v838 = vmul.f32 1.0, %v837
    %v839 = vsub.f32 %v835, %v838
    %v840 = vadd.f32 %v836, 1.0
    %v841 = vrcp.pop %v840
    %v842 = vmul.f32 1.0, %v841
    %v843 = vsub.f32 %v839, %v842
    %v844 = vadd.f32 %v840, 1.0
    %v845 = vrcp.pop %v844
    %v846 = vmul.f32 1.0, %v845
    %v847 = vmul.f32 %v846, %v846
    %v848 = vlog2.pop %v844
    %v849 = vmul.f32 %v848, 0.6931472
    %v850 = vmul.f32 %v846, 0.5
    %v851 = vsub.f32 %v849, %v850
    %v852 = vmul.f32 %v847, 0.003968254
    %v853 = vsub.f32 0.008333334, %v852
    %v854 = vmul.f32 %v847, %v853
    %v855 = vsub.f32 0.083333336, %v854
    %v856 = vmul.f32 %v847, %v855
    %v857 = vsub.f32 %v851, %v856
    %v858 = vadd.f32 %v843, %v857
    %v859 = vrcp.pop %v812
    %v860 = vmul.f32 1.0, %v859
    %v861 = vsub.f32 0.0, %v860
    %v862 = vadd.f32 %v812, 1.0
    %v863 = vrcp.pop %v862
    %v864 = vmul.f32 1.0, %v863
    %v865 = vsub.f32 %v861, %v864
    %v866 = vadd.f32 %v862, 1.0
    %v867 = vrcp.pop %v866
    %v868 = vmul.f32 1.0, %v867
    %v869 = vsub.f32 %v865, %v868
    %v870 = vadd.f32 %v866, 1.0
    %v871 = vrcp.pop %v870
    %v872 = vmul.f32 1.0, %v871
    %v873 = vsub.f32 %v869, %v872
    %v874 = vadd.f32 %v870, 1.0
    %v875 = vrcp.pop %v874
    %v876 = vmul.f32 1.0, %v875
    %v877 = vsub.f32 %v873, %v876
    %v878 = vadd.f32 %v874, 1.0
    %v879 = vrcp.pop %v878
    %v880 = vmul.f32 1.0, %v879
    %v881 = vsub.f32 %v877, %v880
    %v882 = vadd.f32 %v878, 1.0
    %v883 = vrcp.pop %v882
    %v884 = vmul.f32 1.0, %v883
    %v885 = vsub.f32 %v881, %v884
    %v886 = vadd.f32 %v882, 1.0
    %v887 = vrcp.pop %v886
    %v888 = vmul.f32 1.0, %v887
    %v889 = vsub.f32 %v885, %v888
    %v890 = vadd.f32 %v886, 1.0
    %v891 = vrcp.pop %v890
    %v892 = vmul.f32 1.0, %v891
    %v893 = vmul.f32 %v892, %v892
    %v894 = vlog2.pop %v890
    %v895 = vmul.f32 %v894, 0.6931472
    %v896 = vmul.f32 %v892, 0.5
    %v897 = vsub.f32 %v895, %v896
    %v898 = vmul.f32 %v893, 0.003968254
    %v899 = vsub.f32 0.008333334, %v898
    %v900 = vmul.f32 %v893, %v899
    %v901 = vsub.f32 0.083333336, %v900
    %v902 = vmul.f32 %v893, %v901
    %v903 = vsub.f32 %v897, %v902
    %v904 = vadd.f32 %v889, %v903
    %v905 = vsub.f32 %v858, %v904
    %vm906 = vcmask 7168
    %v907 = vsel %vm906, %v905, 0.0
    %908 = vadd.xlane.f32.xlu0 %v907
    %v909 = vpop.xlane.xlu0 %908
    %v910 = vrot.slane %v909, 4
    %v911 = vadd.f32 %v909, %v910
    %v912 = vrot.slane %v911, 2
    %v913 = vadd.f32 %v911, %v912
    %v914 = vrot.slane %v913, 1
    %v915 = vadd.f32 %v913, %v914
    %s916 = vtos %v915
    %s917 = smul.f32 %s916, 0.125
    %v918 = vstv %s917
    %v919 = vadd.f32 %v918, 0.0
    %s920 = scalar_lea.vmem %s7, 32
    %921 = vst [vmem:[%s920] sm:$0xff] %v919
    // Predicated region
    $region46: #{tmc_forward.1} parent=1 // pred_check
      _
    $region47: #{tmc_forward.1} parent=1 // pred_check_branch
      %923 = sbr.rel (0) target = $region49
    $region48: #{tmc_forward.1} parent=1 // pred_region
      _
    $region49: #{tmc_forward.1} parent=1 // pred_fallthru
      _
    // Predicated region
    $region50: #{tmc_forward.1} parent=1 // pred_check
      _
    $region51: #{tmc_forward.1} parent=1 // pred_check_branch
      %925 = sbr.rel (0) target = $region53
    $region52: #{tmc_forward.1} parent=1 // pred_region
      _
    $region53: #{tmc_forward.1} parent=1 // pred_fallthru
      _
    %926 = vsyncpa [#allocation3], 1
    %927 = vsyncpa [#allocation7], 1
    %928 = vsyncpa [#allocation4], 1

</llo_original>
